<compile_context>
chip_gen: v5e
topology: v5e:2x2
jax: 0.10.0
libtpu: 0.0.40
codegen_flags: <defaults>
</compile_context>

<pallas_src>
import functools

import jax
import jax.numpy as jnp
from jax.experimental import pallas as pl
from jax.experimental.pallas import tpu as pltpu

C_IN = 1232   # conv2d81 in_channels / conv2d82 out_channels
C_MID = 308   # conv2d81 out_channels / conv2d82 in_channels


def se_block_kernel(x_ref, w1_ref, b1_ref, w2_ref, b2_ref, o_ref):
    # x_ref:  (TILE_N, C_IN)  f32
    # w1_ref: (C_IN, C_MID)   bf16   b1_ref: (1, C_MID) f32
    # w2_ref: (C_MID, C_IN)   bf16   b2_ref: (1, C_IN)  f32
    # o_ref:  (TILE_N, C_IN)  f32
    x = x_ref[...].astype(jnp.bfloat16)
    # conv2d81 (1x1) == matmul (bf16 MXU, f32 accumulate) + bias + ReLU (f32)
    h = jnp.dot(x, w1_ref[...], preferred_element_type=jnp.float32) + b1_ref[...]
    h = jnp.maximum(h, 0.0)
    # conv2d82 (1x1) == matmul + bias + Sigmoid (f32)
    y = jnp.dot(h.astype(jnp.bfloat16), w2_ref[...],
                preferred_element_type=jnp.float32) + b2_ref[...]
    o_ref[...] = jax.nn.sigmoid(y).astype(o_ref.dtype)


def prepare_params(w1, b1, w2, b2):
    """One-time, load-time weight prep (NOT in the per-call hot path).

    PyTorch Conv2d weights are (C_out, C_in, 1, 1); store them transposed as
    (C_in, C_out) so the kernel computes x @ W, and cast to bf16 to halve the
    HBM weight traffic that dominates this kernel.
    """
    w1_m = jnp.asarray(w1.reshape(C_MID, C_IN).T, dtype=jnp.bfloat16)   # (C_IN, C_MID)
    w2_m = jnp.asarray(w2.reshape(C_IN, C_MID).T, dtype=jnp.bfloat16)   # (C_MID, C_IN)
    b1_m = b1.reshape(1, C_MID).astype(jnp.float32)
    b2_m = b2.reshape(1, C_IN).astype(jnp.float32)
    return w1_m, b1_m, w2_m, b2_m


@functools.partial(jax.jit, static_argnames=("tile_n",))
def se_block(x_nchw, w1_m, b1_m, w2_m, b2_m, *, tile_n=256):
    """x_nchw: (N, C_IN, 1, 1) float32. Returns (N, C_IN, 1, 1) float32."""
    n = x_nchw.shape[0]
    x2d = x_nchw.reshape(n, C_IN)          # layout-preserving -> free bitcast in XLA
    tn = min(tile_n, n)
    grid_n = pl.cdiv(n, tn)

    out2d = pl.pallas_call(
        se_block_kernel,
        out_shape=jax.ShapeDtypeStruct((n, C_IN), jnp.float32),
        grid_spec=pltpu.PrefetchScalarGridSpec(
            num_scalar_prefetch=0,
            grid=(grid_n,),
            in_specs=[
                # activations: tiled over N
                pl.BlockSpec((tn, C_IN), lambda i: (i, 0)),
                # weights/biases: grid-invariant index_map -> DMA'd once, VMEM-resident
                # across all N tiles.  (Double-buffering is left at the default; the
                # extra ~1.5 MB bf16 copy is well within VMEM on all generations.)
                pl.BlockSpec((C_IN, C_MID), lambda i: (0, 0)),
                pl.BlockSpec((1, C_MID), lambda i: (0, 0)),
                pl.BlockSpec((C_MID, C_IN), lambda i: (0, 0)),
                pl.BlockSpec((1, C_IN), lambda i: (0, 0)),
            ],
            out_specs=pl.BlockSpec((tn, C_IN), lambda i: (i, 0)),
        ),
        compiler_params=pltpu.CompilerParams(
            dimension_semantics=("parallel",)),
    )(x2d, w1_m, b1_m, w2_m, b2_m)

    return out2d.reshape(n, C_IN, 1, 1)


def reference(x_nchw, w1, b1, w2, b2):
    """Pure-JAX f32 reference matching the PyTorch module."""
    n = x_nchw.shape[0]
    x = x_nchw.reshape(n, C_IN)
    h = jnp.maximum(x @ w1.reshape(C_MID, C_IN).T + b1, 0.0)
    y = h @ w2.reshape(C_IN, C_MID).T + b2
    return jax.nn.sigmoid(y).reshape(n, C_IN, 1, 1)


if __name__ == "__main__":
    key = jax.random.PRNGKey(0)
    kx, k1, k2, k3, k4 = jax.random.split(key, 5)

    n = 2  # module's own example uses N=1; any N works
    x = jax.random.normal(kx, (n, C_IN, 1, 1), dtype=jnp.float32)

    # Deterministic parameter init (shapes match the nn.Conv2d weights/biases)
    fan1 = C_IN * 1 * 1
    fan2 = C_MID * 1 * 1
    w1 = jax.random.uniform(k1, (C_MID, C_IN, 1, 1), jnp.float32,
                            -1.0 / jnp.sqrt(fan1), 1.0 / jnp.sqrt(fan1))
    b1 = jax.random.uniform(k2, (C_MID,), jnp.float32,
                            -1.0 / jnp.sqrt(fan1), 1.0 / jnp.sqrt(fan1))
    w2 = jax.random.uniform(k3, (C_IN, C_MID, 1, 1), jnp.float32,
                            -1.0 / jnp.sqrt(fan2), 1.0 / jnp.sqrt(fan2))
    b2 = jax.random.uniform(k4, (C_IN,), jnp.float32,
                            -1.0 / jnp.sqrt(fan2), 1.0 / jnp.sqrt(fan2))

    # One-time weight prep outside the hot path.
    params = prepare_params(w1, b1, w2, b2)

    out = se_block(x, *params)
    jax.block_until_ready(out)

    ref = reference(x, w1, b1, w2, b2)
    assert out.shape == (n, C_IN, 1, 1)
    # bf16 weights -> loosened tolerance (sigmoid output in [0,1], observed err ~1e-3).
    assert jnp.allclose(out, ref, atol=1e-2, rtol=1e-2), float(jnp.max(jnp.abs(out - ref)))

    print("KERNEL_OK")
</pallas_src>

<mosaic_0001>
module attributes {stable_mosaic.version = 11 : i64} {
  func.func @se_block_kernel(%arg0: i32, %arg1: memref<2x1232xf32, #tpu.memory_space<vmem>>, %arg2: memref<1232x308xbf16, #tpu.memory_space<vmem>>, %arg3: memref<1x308xf32, #tpu.memory_space<vmem>>, %arg4: memref<308x1232xbf16, #tpu.memory_space<vmem>>, %arg5: memref<1x1232xf32, #tpu.memory_space<vmem>>, %arg6: memref<2x1232xf32, #tpu.memory_space<vmem>>) attributes {dimension_semantics = [#tpu.dimension_semantics<parallel>], iteration_bounds = array<i64: 1>, scalar_prefetch = 0 : i64, scratch_operands = 0 : i64, tpu.core_type = #tpu.core_type<tc>, window_params = [{transform_indices = @transform_0, window_bounds = array<i64: 2, 1232>}, {pipeline_mode = #tpu.pipeline_mode<synchronous>, transform_indices = @transform_1, window_bounds = array<i64: 1232, 308>}, {pipeline_mode = #tpu.pipeline_mode<synchronous>, transform_indices = @transform_2, window_bounds = array<i64: 1, 308>}, {pipeline_mode = #tpu.pipeline_mode<synchronous>, transform_indices = @transform_3, window_bounds = array<i64: 308, 1232>}, {pipeline_mode = #tpu.pipeline_mode<synchronous>, transform_indices = @transform_4, window_bounds = array<i64: 1, 1232>}, {transform_indices = @transform_5, window_bounds = array<i64: 2, 1232>}]} {
    %c0 = arith.constant 0 : index
    %c0_0 = arith.constant 0 : index
    %0 = vector.load %arg1[%c0, %c0_0] : memref<2x1232xf32, #tpu.memory_space<vmem>>, vector<2x1232xf32>
    %1 = arith.truncf %0 : vector<2x1232xf32> to vector<2x1232xbf16>
    %c0_1 = arith.constant 0 : index
    %c0_2 = arith.constant 0 : index
    %2 = vector.load %arg2[%c0_1, %c0_2] : memref<1232x308xbf16, #tpu.memory_space<vmem>>, vector<1232x308xbf16>
    %cst = arith.constant dense<0.000000e+00> : vector<2x308xf32>
    %3 = tpu.matmul %1, %2, %cst {dimension_numbers = #tpu.dot_dimension_numbers<[1], [0], [0], [1], [0, 0, 1, 1], [], []>} : vector<2x1232xbf16>, vector<1232x308xbf16>, vector<2x308xf32> -> vector<2x308xf32>
    %c0_3 = arith.constant 0 : index
    %c0_4 = arith.constant 0 : index
    %4 = vector.load %arg3[%c0_3, %c0_4] : memref<1x308xf32, #tpu.memory_space<vmem>>, vector<1x308xf32>
    %5 = vector.broadcast %4 : vector<1x308xf32> to vector<2x308xf32>
    %6 = arith.addf %3, %5 : vector<2x308xf32>
    %cst_5 = arith.constant 0.000000e+00 : f32
    %7 = vector.broadcast %cst_5 : f32 to vector<2x308xf32>
    %8 = arith.maximumf %6, %7 : vector<2x308xf32>
    %9 = arith.truncf %8 : vector<2x308xf32> to vector<2x308xbf16>
    %c0_6 = arith.constant 0 : index
    %c0_7 = arith.constant 0 : index
    %10 = vector.load %arg4[%c0_6, %c0_7] : memref<308x1232xbf16, #tpu.memory_space<vmem>>, vector<308x1232xbf16>
    %cst_8 = arith.constant dense<0.000000e+00> : vector<2x1232xf32>
    %11 = tpu.matmul %9, %10, %cst_8 {dimension_numbers = #tpu.dot_dimension_numbers<[1], [0], [0], [1], [0, 0, 1, 1], [], []>} : vector<2x308xbf16>, vector<308x1232xbf16>, vector<2x1232xf32> -> vector<2x1232xf32>
    %c0_9 = arith.constant 0 : index
    %c0_10 = arith.constant 0 : index
    %12 = vector.load %arg5[%c0_9, %c0_10] : memref<1x1232xf32, #tpu.memory_space<vmem>>, vector<1x1232xf32>
    %13 = vector.broadcast %12 : vector<1x1232xf32> to vector<2x1232xf32>
    %14 = arith.addf %11, %13 : vector<2x1232xf32>
    %15 = arith.negf %14 : vector<2x1232xf32>
    %16 = math.exp %15 : vector<2x1232xf32>
    %cst_11 = arith.constant 1.000000e+00 : f32
    %17 = vector.broadcast %cst_11 : f32 to vector<2x1232xf32>
    %18 = arith.addf %17, %16 : vector<2x1232xf32>
    %19 = arith.divf %17, %18 : vector<2x1232xf32>
    %c0_12 = arith.constant 0 : index
    %c0_13 = arith.constant 0 : index
    %20 = vector.load %arg6[%c0_12, %c0_13] : memref<2x1232xf32, #tpu.memory_space<vmem>>, vector<2x1232xf32>
    tpu.vector_store %arg6[%c0_12, %c0_13], %19 {strides = array<i32>} : memref<2x1232xf32, #tpu.memory_space<vmem>>, vector<2x1232xf32>,
    return
  }
  func.func @transform_0(%arg0: i32) -> (i32, i32) {
    %c0_i32 = arith.constant 0 : i32
    %c0_i32_0 = arith.constant 0 : i32
    return %arg0, %c0_i32 : i32, i32
  }
  func.func @transform_1(%arg0: i32) -> (i32, i32) {
    %c0_i32 = arith.constant 0 : i32
    %c0_i32_0 = arith.constant 0 : i32
    %c0_i32_1 = arith.constant 0 : i32
    return %c0_i32, %c0_i32_0 : i32, i32
  }
  func.func @transform_2(%arg0: i32) -> (i32, i32) {
    %c0_i32 = arith.constant 0 : i32
    %c0_i32_0 = arith.constant 0 : i32
    %c0_i32_1 = arith.constant 0 : i32
    return %c0_i32, %c0_i32_0 : i32, i32
  }
  func.func @transform_3(%arg0: i32) -> (i32, i32) {
    %c0_i32 = arith.constant 0 : i32
    %c0_i32_0 = arith.constant 0 : i32
    %c0_i32_1 = arith.constant 0 : i32
    return %c0_i32, %c0_i32_0 : i32, i32
  }
  func.func @transform_4(%arg0: i32) -> (i32, i32) {
    %c0_i32 = arith.constant 0 : i32
    %c0_i32_0 = arith.constant 0 : i32
    %c0_i32_1 = arith.constant 0 : i32
    return %c0_i32, %c0_i32_0 : i32, i32
  }
  func.func @transform_5(%arg0: i32) -> (i32, i32) {
    %c0_i32 = arith.constant 0 : i32
    %c0_i32_0 = arith.constant 0 : i32
    return %arg0, %c0_i32 : i32, i32
  }
}

</mosaic_0001>

<llo_original>
// kernel: se_block.1
$region0: #{se_block.1}
  #allocation0 [shape = 'u32[]', space=smem, size = 0x4, offset = 0x4, fixed_abs, tag = 'smem constant byte address 0x4 - core index']
  #allocation1 [shape = 'u32[72,128]{1,0:T(1,128)}', space=vmem, size = 0x9000, scoped, tag = 'internal scratch']
  %s0 = inlined_call_operand.vmem [shape: f32[2,1232], index: 0, kind: input, shape index: {}]
  %s1 = inlined_call_operand.vmem [shape: bf16[1232,308], index: 1, kind: input, shape index: {}]
  %s2 = inlined_call_operand.vmem [shape: f32[1,308], index: 2, kind: input, shape index: {}]
  %s3 = inlined_call_operand.vmem [shape: bf16[308,1232], index: 3, kind: input, shape index: {}]
  %s4 = inlined_call_operand.vmem [shape: f32[1,1232], index: 4, kind: input, shape index: {}]
  %s5 = inlined_call_operand.vmem [shape: f32[2,1232], index: 5, kind: output, shape index: {}]
  %s6 = sld [smem:[#allocation0]]
  $region30: #{se_block.1} parent=0
    _
  %s8 = ssub.s32 1, %s6
  %s9 = scalar_select 0, %s8, %s6
  // Predicated region
  $region2: #{se_block.1} parent=0 // pred_check
    _
  $region3: #{se_block.1} parent=0 // pred_check_branch
    %11 = sbr.rel (0) target = $region5
  $region4: #{se_block.1} parent=0 // pred_region
    _
  $region5: #{se_block.1} parent=0 // pred_fallthru
    _
  // Predicated region
  $region6: #{se_block.1} parent=0 // pred_check
    _
  $region7: #{se_block.1} parent=0 // pred_check_branch
    %13 = sbr.rel (0) target = $region9
  $region8: #{se_block.1} parent=0 // pred_region
    _
  $region9: #{se_block.1} parent=0 // pred_fallthru
    _
  // Predicated region
  $region10: #{se_block.1} parent=0 // pred_check
    _
  $region11: #{se_block.1} parent=0 // pred_check_branch
    %15 = sbr.rel (0) target = $region13
  $region12: #{se_block.1} parent=0 // pred_region
    _
  $region13: #{se_block.1} parent=0 // pred_fallthru
    _
  // Predicated region
  $region14: #{se_block.1} parent=0 // pred_check
    _
  $region15: #{se_block.1} parent=0 // pred_check_branch
    %17 = sbr.rel (0) target = $region17
  $region16: #{se_block.1} parent=0 // pred_region
    _
  $region17: #{se_block.1} parent=0 // pred_fallthru
    _
  // Predicated region
  $region18: #{se_block.1} parent=0 // pred_check
    _
  $region19: #{se_block.1} parent=0 // pred_check_branch
    %19 = sbr.rel (0) target = $region21
  $region20: #{se_block.1} parent=0 // pred_region
    _
  $region21: #{se_block.1} parent=0 // pred_fallthru
    _
  %v21 = vld [vmem:[%s0] sm:$0xff]
  %v22 = vld [vmem:[%s0 + $0x8] sm:$0xff]
  %v23 = vld [vmem:[%s0 + $0x10] sm:$0xf]
  %27 = vst [vmem:[#allocation1] ss:$4 sm:$0xff] %v21
  %s28 = scalar_lea.vmem [#allocation1], 32
  %29 = vst [vmem:[%s28] ss:$4 sm:$0xff] %v22
  %v30 = vld.sshfl [vmem:[#allocation1] sm:$0xff pattern:$0x73625140]
  %v31 = vld.sshfl [vmem:[#allocation1 + $0x8] sm:$0xff pattern:$0x73625140]
  %v32 = vld.sshfl [vmem:[#allocation1 + $0x10] sm:$0xff pattern:$0x73625140]
  %v33 = vld.sshfl [vmem:[#allocation1 + $0x18] sm:$0xff pattern:$0x73625140]
  %v34 = vld.sshfl [vmem:[#allocation1 + $0x20] sm:$0xff pattern:$0x73625140]
  %v35 = vld.sshfl [vmem:[#allocation1 + $0x28] sm:$0xff pattern:$0x73625140]
  %v36 = vld.sshfl [vmem:[#allocation1 + $0x30] sm:$0xff pattern:$0x73625140]
  %v37 = vld.sshfl [vmem:[#allocation1 + $0x38] sm:$0xff pattern:$0x73625140]
  %38 = vst [vmem:[#allocation1] ss:$4 sm:$0xff] %v23
  %v39 = vld.sshfl [vmem:[#allocation1] sm:$0xff pattern:$0x73625140]
  %v40 = vld.sshfl [vmem:[#allocation1 + $0x8] sm:$0xff pattern:$0x73625140]
  %v51 = vpack.c.bf16 %v30, %v30
  %v52 = vpack.c.bf16 %v31, %v31
  %v53 = vpack.c.bf16 %v32, %v32
  %v54 = vpack.c.bf16 %v33, %v33
  %v55 = vpack.c.bf16 %v34, %v34
  %v56 = vpack.c.bf16 %v35, %v35
  %v57 = vpack.c.bf16 %v36, %v36
  %v58 = vpack.c.bf16 %v37, %v37
  %v59 = vpack.c.bf16 %v39, %v39
  %v60 = vpack.c.bf16 %v40, %v40
  %v61 = vld [vmem:[%s1] sm:$0xff]
  %v62 = vld [vmem:[%s1 + $0x8] sm:$0xf]
  %v63 = vld [vmem:[%s1 + $0xc] sm:$0xff]
  %v64 = vld [vmem:[%s1 + $0x14] sm:$0xf]
  %v65 = vld [vmem:[%s1 + $0x18] sm:$0xff]
  %v66 = vld [vmem:[%s1 + $0x20] sm:$0xf]
  %v67 = vld [vmem:[%s1 + $0x24] sm:$0xff]
  %v68 = vld [vmem:[%s1 + $0x2c] sm:$0xf]
  %v69 = vld [vmem:[%s1 + $0x30] sm:$0xff]
  %v70 = vld [vmem:[%s1 + $0x38] sm:$0xf]
  %v71 = vld [vmem:[%s1 + $0x3c] sm:$0xff]
  %v72 = vld [vmem:[%s1 + $0x44] sm:$0xf]
  %v73 = vld [vmem:[%s1 + $0x48] sm:$0xff]
  %v74 = vld [vmem:[%s1 + $0x50] sm:$0xf]
  %v75 = vld [vmem:[%s1 + $0x54] sm:$0xff]
  %v76 = vld [vmem:[%s1 + $0x5c] sm:$0xf]
  %v77 = vld [vmem:[%s1 + $0x60] sm:$0xff]
  %v78 = vld [vmem:[%s1 + $0x68] sm:$0xf]
  %v79 = vld [vmem:[%s1 + $0x6c] sm:$0xff]
  %v80 = vld [vmem:[%s1 + $0x74] sm:$0xf]
  %v81 = vld [vmem:[%s1 + $0x78] sm:$0xff]
  %v82 = vld [vmem:[%s1 + $0x80] sm:$0xf]
  %v83 = vld [vmem:[%s1 + $0x84] sm:$0xff]
  %v84 = vld [vmem:[%s1 + $0x8c] sm:$0xf]
  %v85 = vld [vmem:[%s1 + $0x90] sm:$0xff]
  %v86 = vld [vmem:[%s1 + $0x98] sm:$0xf]
  %v87 = vld [vmem:[%s1 + $0x9c] sm:$0xff]
  %v88 = vld [vmem:[%s1 + $0xa4] sm:$0xf]
  %v89 = vld [vmem:[%s1 + $0xa8] sm:$0xff]
  %v90 = vld [vmem:[%s1 + $0xb0] sm:$0xf]
  %v91 = vld [vmem:[%s1 + $0xb4] sm:$0xff]
  %v92 = vld [vmem:[%s1 + $0xbc] sm:$0xf]
  %v93 = vld [vmem:[%s1 + $0xc0] sm:$0xff]
  %v94 = vld [vmem:[%s1 + $0xc8] sm:$0xf]
  %v95 = vld [vmem:[%s1 + $0xcc] sm:$0xff]
  %v96 = vld [vmem:[%s1 + $0xd4] sm:$0xf]
  %v97 = vld [vmem:[%s1 + $0xd8] sm:$0xff]
  %v98 = vld [vmem:[%s1 + $0xe0] sm:$0xf]
  %v99 = vld [vmem:[%s1 + $0xe4] sm:$0xff]
  %v100 = vld [vmem:[%s1 + $0xec] sm:$0xf]
  %v101 = vld [vmem:[%s1 + $0xf0] sm:$0xff]
  %v102 = vld [vmem:[%s1 + $0xf8] sm:$0xf]
  %v103 = vld [vmem:[%s1 + $0xfc] sm:$0xff]
  %v104 = vld [vmem:[%s1 + $0x104] sm:$0xf]
  %v105 = vld [vmem:[%s1 + $0x108] sm:$0xff]
  %v106 = vld [vmem:[%s1 + $0x110] sm:$0xf]
  %v107 = vld [vmem:[%s1 + $0x114] sm:$0xff]
  %v108 = vld [vmem:[%s1 + $0x11c] sm:$0xf]
  %v109 = vld [vmem:[%s1 + $0x120] sm:$0xff]
  %v110 = vld [vmem:[%s1 + $0x128] sm:$0xf]
  %v111 = vld [vmem:[%s1 + $0x12c] sm:$0xff]
  %v112 = vld [vmem:[%s1 + $0x134] sm:$0xf]
  %v113 = vld [vmem:[%s1 + $0x138] sm:$0xff]
  %v114 = vld [vmem:[%s1 + $0x140] sm:$0xf]
  %v115 = vld [vmem:[%s1 + $0x144] sm:$0xff]
  %v116 = vld [vmem:[%s1 + $0x14c] sm:$0xf]
  %v117 = vld [vmem:[%s1 + $0x150] sm:$0xff]
  %v118 = vld [vmem:[%s1 + $0x158] sm:$0xf]
  %v119 = vld [vmem:[%s1 + $0x15c] sm:$0xff]
  %v120 = vld [vmem:[%s1 + $0x164] sm:$0xf]
  %v121 = vld [vmem:[%s1 + $0x168] sm:$0xff]
  %v122 = vld [vmem:[%s1 + $0x170] sm:$0xf]
  %v123 = vld [vmem:[%s1 + $0x174] sm:$0xff]
  %v124 = vld [vmem:[%s1 + $0x17c] sm:$0xf]
  %v125 = vld [vmem:[%s1 + $0x180] sm:$0xff]
  %v126 = vld [vmem:[%s1 + $0x188] sm:$0xf]
  %v127 = vld [vmem:[%s1 + $0x18c] sm:$0xff]
  %v128 = vld [vmem:[%s1 + $0x194] sm:$0xf]
  %v129 = vld [vmem:[%s1 + $0x198] sm:$0xff]
  %v130 = vld [vmem:[%s1 + $0x1a0] sm:$0xf]
  %v131 = vld [vmem:[%s1 + $0x1a4] sm:$0xff]
  %v132 = vld [vmem:[%s1 + $0x1ac] sm:$0xf]
  %v133 = vld [vmem:[%s1 + $0x1b0] sm:$0xff]
  %v134 = vld [vmem:[%s1 + $0x1b8] sm:$0xf]
  %v135 = vld [vmem:[%s1 + $0x1bc] sm:$0xff]
  %v136 = vld [vmem:[%s1 + $0x1c4] sm:$0xf]
  %v137 = vld [vmem:[%s1 + $0x1c8] sm:$0xff]
  %v138 = vld [vmem:[%s1 + $0x1d0] sm:$0xf]
  %v139 = vld [vmem:[%s1 + $0x1d4] sm:$0xff]
  %v140 = vld [vmem:[%s1 + $0x1dc] sm:$0xf]
  %v141 = vld [vmem:[%s1 + $0x1e0] sm:$0xff]
  %v142 = vld [vmem:[%s1 + $0x1e8] sm:$0xf]
  %v143 = vld [vmem:[%s1 + $0x1ec] sm:$0xff]
  %v144 = vld [vmem:[%s1 + $0x1f4] sm:$0xf]
  %v145 = vld [vmem:[%s1 + $0x1f8] sm:$0xff]
  %v146 = vld [vmem:[%s1 + $0x200] sm:$0xf]
  %v147 = vld [vmem:[%s1 + $0x204] sm:$0xff]
  %v148 = vld [vmem:[%s1 + $0x20c] sm:$0xf]
  %v149 = vld [vmem:[%s1 + $0x210] sm:$0xff]
  %v150 = vld [vmem:[%s1 + $0x218] sm:$0xf]
  %v151 = vld [vmem:[%s1 + $0x21c] sm:$0xff]
  %v152 = vld [vmem:[%s1 + $0x224] sm:$0xf]
  %v153 = vld [vmem:[%s1 + $0x228] sm:$0xff]
  %v154 = vld [vmem:[%s1 + $0x230] sm:$0xf]
  %v155 = vld [vmem:[%s1 + $0x234] sm:$0xff]
  %v156 = vld [vmem:[%s1 + $0x23c] sm:$0xf]
  %v157 = vld [vmem:[%s1 + $0x240] sm:$0xff]
  %v158 = vld [vmem:[%s1 + $0x248] sm:$0xf]
  %v159 = vld [vmem:[%s1 + $0x24c] sm:$0xff]
  %v160 = vld [vmem:[%s1 + $0x254] sm:$0xf]
  %v161 = vld [vmem:[%s1 + $0x258] sm:$0xff]
  %v162 = vld [vmem:[%s1 + $0x260] sm:$0xf]
  %v163 = vld [vmem:[%s1 + $0x264] sm:$0xff]
  %v164 = vld [vmem:[%s1 + $0x26c] sm:$0xf]
  %v165 = vld [vmem:[%s1 + $0x270] sm:$0xff]
  %v166 = vld [vmem:[%s1 + $0x278] sm:$0xf]
  %v167 = vld [vmem:[%s1 + $0x27c] sm:$0xff]
  %v168 = vld [vmem:[%s1 + $0x284] sm:$0xf]
  %v169 = vld [vmem:[%s1 + $0x288] sm:$0xff]
  %v170 = vld [vmem:[%s1 + $0x290] sm:$0xf]
  %v171 = vld [vmem:[%s1 + $0x294] sm:$0xff]
  %v172 = vld [vmem:[%s1 + $0x29c] sm:$0xf]
  %v173 = vld [vmem:[%s1 + $0x2a0] sm:$0xff]
  %v174 = vld [vmem:[%s1 + $0x2a8] sm:$0xf]
  %v175 = vld [vmem:[%s1 + $0x2ac] sm:$0xff]
  %v176 = vld [vmem:[%s1 + $0x2b4] sm:$0xf]
  %v177 = vld [vmem:[%s1 + $0x2b8] sm:$0xff]
  %v178 = vld [vmem:[%s1 + $0x2c0] sm:$0xf]
  %v179 = vld [vmem:[%s1 + $0x2c4] sm:$0xff]
  %v180 = vld [vmem:[%s1 + $0x2cc] sm:$0xf]
  %v181 = vld [vmem:[%s1 + $0x2d0] sm:$0xff]
  %v182 = vld [vmem:[%s1 + $0x2d8] sm:$0xf]
  %v183 = vld [vmem:[%s1 + $0x2dc] sm:$0xff]
  %v184 = vld [vmem:[%s1 + $0x2e4] sm:$0xf]
  %v185 = vld [vmem:[%s1 + $0x2e8] sm:$0xff]
  %v186 = vld [vmem:[%s1 + $0x2f0] sm:$0xf]
  %v187 = vld [vmem:[%s1 + $0x2f4] sm:$0xff]
  %v188 = vld [vmem:[%s1 + $0x2fc] sm:$0xf]
  %v189 = vld [vmem:[%s1 + $0x300] sm:$0xff]
  %v190 = vld [vmem:[%s1 + $0x308] sm:$0xf]
  %v191 = vld [vmem:[%s1 + $0x30c] sm:$0xff]
  %v192 = vld [vmem:[%s1 + $0x314] sm:$0xf]
  %v193 = vld [vmem:[%s1 + $0x318] sm:$0xff]
  %v194 = vld [vmem:[%s1 + $0x320] sm:$0xf]
  %v195 = vld [vmem:[%s1 + $0x324] sm:$0xff]
  %v196 = vld [vmem:[%s1 + $0x32c] sm:$0xf]
  %v197 = vld [vmem:[%s1 + $0x330] sm:$0xff]
  %v198 = vld [vmem:[%s1 + $0x338] sm:$0xf]
  %v199 = vld [vmem:[%s1 + $0x33c] sm:$0xff]
  %v200 = vld [vmem:[%s1 + $0x344] sm:$0xf]
  %v201 = vld [vmem:[%s1 + $0x348] sm:$0xff]
  %v202 = vld [vmem:[%s1 + $0x350] sm:$0xf]
  %v203 = vld [vmem:[%s1 + $0x354] sm:$0xff]
  %v204 = vld [vmem:[%s1 + $0x35c] sm:$0xf]
  %v205 = vld [vmem:[%s1 + $0x360] sm:$0xff]
  %v206 = vld [vmem:[%s1 + $0x368] sm:$0xf]
  %v207 = vld [vmem:[%s1 + $0x36c] sm:$0xff]
  %v208 = vld [vmem:[%s1 + $0x374] sm:$0xf]
  %v209 = vld [vmem:[%s1 + $0x378] sm:$0xff]
  %v210 = vld [vmem:[%s1 + $0x380] sm:$0xf]
  %v211 = vld [vmem:[%s1 + $0x384] sm:$0xff]
  %v212 = vld [vmem:[%s1 + $0x38c] sm:$0xf]
  %v213 = vld [vmem:[%s1 + $0x390] sm:$0xff]
  %v214 = vld [vmem:[%s1 + $0x398] sm:$0xf]
  %v215 = vld [vmem:[%s1 + $0x39c] sm:$0xff]
  %v216 = vld [vmem:[%s1 + $0x3a4] sm:$0xf]
  %v217 = vld [vmem:[%s1 + $0x3a8] sm:$0xff]
  %v218 = vld [vmem:[%s1 + $0x3b0] sm:$0xf]
  %v219 = vld [vmem:[%s1 + $0x3b4] sm:$0xff]
  %v220 = vld [vmem:[%s1 + $0x3bc] sm:$0xf]
  %v221 = vld [vmem:[%s1 + $0x3c0] sm:$0xff]
  %v222 = vld [vmem:[%s1 + $0x3c8] sm:$0xf]
  %v223 = vld [vmem:[%s1 + $0x3cc] sm:$0xff]
  %v224 = vld [vmem:[%s1 + $0x3d4] sm:$0xf]
  %v225 = vld [vmem:[%s1 + $0x3d8] sm:$0xff]
  %v226 = vld [vmem:[%s1 + $0x3e0] sm:$0xf]
  %v227 = vld [vmem:[%s1 + $0x3e4] sm:$0xff]
  %v228 = vld [vmem:[%s1 + $0x3ec] sm:$0xf]
  %v229 = vld [vmem:[%s1 + $0x3f0] sm:$0xff]
  %v230 = vld [vmem:[%s1 + $0x3f8] sm:$0xf]
  %v231 = vld [vmem:[%s1 + $0x3fc] sm:$0xff]
  %v232 = vld [vmem:[%s1 + $0x404] sm:$0xf]
  %v233 = vld [vmem:[%s1 + $0x408] sm:$0xff]
  %v234 = vld [vmem:[%s1 + $0x410] sm:$0xf]
  %v235 = vld [vmem:[%s1 + $0x414] sm:$0xff]
  %v236 = vld [vmem:[%s1 + $0x41c] sm:$0xf]
  %v237 = vld [vmem:[%s1 + $0x420] sm:$0xff]
  %v238 = vld [vmem:[%s1 + $0x428] sm:$0xf]
  %v239 = vld [vmem:[%s1 + $0x42c] sm:$0xff]
  %v240 = vld [vmem:[%s1 + $0x434] sm:$0xf]
  %v241 = vld [vmem:[%s1 + $0x438] sm:$0xff]
  %v242 = vld [vmem:[%s1 + $0x440] sm:$0xf]
  %v243 = vld [vmem:[%s1 + $0x444] sm:$0xff]
  %v244 = vld [vmem:[%s1 + $0x44c] sm:$0xf]
  %v245 = vld [vmem:[%s1 + $0x450] sm:$0xff]
  %v246 = vld [vmem:[%s1 + $0x458] sm:$0xf]
  %v247 = vld [vmem:[%s1 + $0x45c] sm:$0xff]
  %v248 = vld [vmem:[%s1 + $0x464] sm:$0xf]
  %v249 = vld [vmem:[%s1 + $0x468] sm:$0xff]
  %v250 = vld [vmem:[%s1 + $0x470] sm:$0xf]
  %v251 = vld [vmem:[%s1 + $0x474] sm:$0xff]
  %v252 = vld [vmem:[%s1 + $0x47c] sm:$0xf]
  %v253 = vld [vmem:[%s1 + $0x480] sm:$0xff]
  %v254 = vld [vmem:[%s1 + $0x488] sm:$0xf]
  %v255 = vld [vmem:[%s1 + $0x48c] sm:$0xff]
  %v256 = vld [vmem:[%s1 + $0x494] sm:$0xf]
  %v257 = vld [vmem:[%s1 + $0x498] sm:$0xff]
  %v258 = vld [vmem:[%s1 + $0x4a0] sm:$0xf]
  %v259 = vld [vmem:[%s1 + $0x4a4] sm:$0xff]
  %v260 = vld [vmem:[%s1 + $0x4ac] sm:$0xf]
  %v261 = vld [vmem:[%s1 + $0x4b0] sm:$0xff]
  %v262 = vld [vmem:[%s1 + $0x4b8] sm:$0xf]
  %v263 = vld [vmem:[%s1 + $0x4bc] sm:$0xff]
  %v264 = vld [vmem:[%s1 + $0x4c4] sm:$0xf]
  %v265 = vld [vmem:[%s1 + $0x4c8] sm:$0xff]
  %v266 = vld [vmem:[%s1 + $0x4d0] sm:$0xf]
  %v267 = vld [vmem:[%s1 + $0x4d4] sm:$0xff]
  %v268 = vld [vmem:[%s1 + $0x4dc] sm:$0xf]
  %v269 = vld [vmem:[%s1 + $0x4e0] sm:$0xff]
  %v270 = vld [vmem:[%s1 + $0x4e8] sm:$0xf]
  %v271 = vld [vmem:[%s1 + $0x4ec] sm:$0xff]
  %v272 = vld [vmem:[%s1 + $0x4f4] sm:$0xf]
  %v273 = vld [vmem:[%s1 + $0x4f8] sm:$0xff]
  %v274 = vld [vmem:[%s1 + $0x500] sm:$0xf]
  %v275 = vld [vmem:[%s1 + $0x504] sm:$0xff]
  %v276 = vld [vmem:[%s1 + $0x50c] sm:$0xf]
  %v277 = vld [vmem:[%s1 + $0x510] sm:$0xff]
  %v278 = vld [vmem:[%s1 + $0x518] sm:$0xf]
  %v279 = vld [vmem:[%s1 + $0x51c] sm:$0xff]
  %v280 = vld [vmem:[%s1 + $0x524] sm:$0xf]
  %v281 = vld [vmem:[%s1 + $0x528] sm:$0xff]
  %v282 = vld [vmem:[%s1 + $0x530] sm:$0xf]
  %v283 = vld [vmem:[%s1 + $0x534] sm:$0xff]
  %v284 = vld [vmem:[%s1 + $0x53c] sm:$0xf]
  %v285 = vld [vmem:[%s1 + $0x540] sm:$0xff]
  %v286 = vld [vmem:[%s1 + $0x548] sm:$0xf]
  %v287 = vld [vmem:[%s1 + $0x54c] sm:$0xff]
  %v288 = vld [vmem:[%s1 + $0x554] sm:$0xf]
  %v289 = vld [vmem:[%s1 + $0x558] sm:$0xff]
  %v290 = vld [vmem:[%s1 + $0x560] sm:$0xf]
  %v291 = vld [vmem:[%s1 + $0x564] sm:$0xff]
  %v292 = vld [vmem:[%s1 + $0x56c] sm:$0xf]
  %v293 = vld [vmem:[%s1 + $0x570] sm:$0xff]
  %v294 = vld [vmem:[%s1 + $0x578] sm:$0xf]
  %v295 = vld [vmem:[%s1 + $0x57c] sm:$0xff]
  %v296 = vld [vmem:[%s1 + $0x584] sm:$0xf]
  %v297 = vld [vmem:[%s1 + $0x588] sm:$0xff]
  %v298 = vld [vmem:[%s1 + $0x590] sm:$0xf]
  %v299 = vld [vmem:[%s1 + $0x594] sm:$0xff]
  %v300 = vld [vmem:[%s1 + $0x59c] sm:$0xf]
  %v301 = vld [vmem:[%s1 + $0x5a0] sm:$0xff]
  %v302 = vld [vmem:[%s1 + $0x5a8] sm:$0xf]
  %v303 = vld [vmem:[%s1 + $0x5ac] sm:$0xff]
  %v304 = vld [vmem:[%s1 + $0x5b4] sm:$0xf]
  %v305 = vld [vmem:[%s1 + $0x5b8] sm:$0xff]
  %v306 = vld [vmem:[%s1 + $0x5c0] sm:$0xf]
  %v307 = vld [vmem:[%s1 + $0x5c4] sm:$0xff]
  %v308 = vld [vmem:[%s1 + $0x5cc] sm:$0xf]
  %v309 = vld [vmem:[%s1 + $0x5d0] sm:$0xff]
  %v310 = vld [vmem:[%s1 + $0x5d8] sm:$0xf]
  %v311 = vld [vmem:[%s1 + $0x5dc] sm:$0xff]
  %v312 = vld [vmem:[%s1 + $0x5e4] sm:$0xf]
  %v313 = vld [vmem:[%s1 + $0x5e8] sm:$0xff]
  %v314 = vld [vmem:[%s1 + $0x5f0] sm:$0xf]
  %v315 = vld [vmem:[%s1 + $0x5f4] sm:$0xff]
  %v316 = vld [vmem:[%s1 + $0x5fc] sm:$0xf]
  %v317 = vld [vmem:[%s1 + $0x600] sm:$0xff]
  %v318 = vld [vmem:[%s1 + $0x608] sm:$0xf]
  %v319 = vld [vmem:[%s1 + $0x60c] sm:$0xff]
  %v320 = vld [vmem:[%s1 + $0x614] sm:$0xf]
  %v321 = vld [vmem:[%s1 + $0x618] sm:$0xff]
  %v322 = vld [vmem:[%s1 + $0x620] sm:$0xf]
  %v323 = vld [vmem:[%s1 + $0x624] sm:$0xff]
  %v324 = vld [vmem:[%s1 + $0x62c] sm:$0xf]
  %v325 = vld [vmem:[%s1 + $0x630] sm:$0xff]
  %v326 = vld [vmem:[%s1 + $0x638] sm:$0xf]
  %v327 = vld [vmem:[%s1 + $0x63c] sm:$0xff]
  %v328 = vld [vmem:[%s1 + $0x644] sm:$0xf]
  %v329 = vld [vmem:[%s1 + $0x648] sm:$0xff]
  %v330 = vld [vmem:[%s1 + $0x650] sm:$0xf]
  %v331 = vld [vmem:[%s1 + $0x654] sm:$0xff]
  %v332 = vld [vmem:[%s1 + $0x65c] sm:$0xf]
  %v333 = vld [vmem:[%s1 + $0x660] sm:$0xff]
  %v334 = vld [vmem:[%s1 + $0x668] sm:$0xf]
  %v335 = vld [vmem:[%s1 + $0x66c] sm:$0xff]
  %v336 = vld [vmem:[%s1 + $0x674] sm:$0xf]
  %v337 = vld [vmem:[%s1 + $0x678] sm:$0xff]
  %v338 = vld [vmem:[%s1 + $0x680] sm:$0xf]
  %v339 = vld [vmem:[%s1 + $0x684] sm:$0xff]
  %v340 = vld [vmem:[%s1 + $0x68c] sm:$0xf]
  %v341 = vld [vmem:[%s1 + $0x690] sm:$0xff]
  %v342 = vld [vmem:[%s1 + $0x698] sm:$0xf]
  %v343 = vld [vmem:[%s1 + $0x69c] sm:$0xff]
  %v344 = vld [vmem:[%s1 + $0x6a4] sm:$0xf]
  %v345 = vld [vmem:[%s1 + $0x6a8] sm:$0xff]
  %v346 = vld [vmem:[%s1 + $0x6b0] sm:$0xf]
  %v347 = vld [vmem:[%s1 + $0x6b4] sm:$0xff]
  %v348 = vld [vmem:[%s1 + $0x6bc] sm:$0xf]
  %v349 = vld [vmem:[%s1 + $0x6c0] sm:$0xff]
  %v350 = vld [vmem:[%s1 + $0x6c8] sm:$0xf]
  %v351 = vld [vmem:[%s1 + $0x6cc] sm:$0xff]
  %v352 = vld [vmem:[%s1 + $0x6d4] sm:$0xf]
  %v353 = vld [vmem:[%s1 + $0x6d8] sm:$0xff]
  %v354 = vld [vmem:[%s1 + $0x6e0] sm:$0xf]
  %v355 = vld [vmem:[%s1 + $0x6e4] sm:$0xff]
  %v356 = vld [vmem:[%s1 + $0x6ec] sm:$0xf]
  %v357 = vld [vmem:[%s1 + $0x6f0] sm:$0xff]
  %v358 = vld [vmem:[%s1 + $0x6f8] sm:$0xf]
  %v359 = vld [vmem:[%s1 + $0x6fc] sm:$0xff]
  %v360 = vld [vmem:[%s1 + $0x704] sm:$0xf]
  %v361 = vld [vmem:[%s1 + $0x708] sm:$0xff]
  %v362 = vld [vmem:[%s1 + $0x710] sm:$0xf]
  %v363 = vld [vmem:[%s1 + $0x714] sm:$0xff]
  %v364 = vld [vmem:[%s1 + $0x71c] sm:$0xf]
  %v365 = vld [vmem:[%s1 + $0x720] sm:$0xff]
  %v366 = vld [vmem:[%s1 + $0x728] sm:$0xf]
  %v367 = vld [vmem:[%s1 + $0x72c] sm:$0xff]
  %v368 = vld [vmem:[%s1 + $0x734] sm:$0xf]
  %v369 = vld [vmem:[%s2] sm:$0x7]
  %v371 = vperm.slane %v369, 0
  %v372 = vperm.slane %v369, 1
  %v373 = vperm.slane %v369, 2
  %v685 = vunpack.c.l.b16 %v61
  %v686 = vunpack.c.h.b16 %v61
  %v687 = vunpack.c.l.b16 %v62
  %v688 = vunpack.c.l.b16 %v63
  %v689 = vunpack.c.h.b16 %v63
  %v690 = vunpack.c.l.b16 %v64
  %v691 = vunpack.c.l.b16 %v65
  %v692 = vunpack.c.h.b16 %v65
  %v693 = vunpack.c.l.b16 %v66
  %v694 = vunpack.c.l.b16 %v67
  %v695 = vunpack.c.h.b16 %v67
  %v696 = vunpack.c.l.b16 %v68
  %v697 = vunpack.c.l.b16 %v69
  %v698 = vunpack.c.h.b16 %v69
  %v699 = vunpack.c.l.b16 %v70
  %v700 = vunpack.c.l.b16 %v71
  %v701 = vunpack.c.h.b16 %v71
  %v702 = vunpack.c.l.b16 %v72
  %v703 = vunpack.c.l.b16 %v73
  %v704 = vunpack.c.h.b16 %v73
  %v705 = vunpack.c.l.b16 %v74
  %v706 = vunpack.c.l.b16 %v75
  %v707 = vunpack.c.h.b16 %v75
  %v708 = vunpack.c.l.b16 %v76
  %v709 = vunpack.c.l.b16 %v77
  %v710 = vunpack.c.h.b16 %v77
  %v711 = vunpack.c.l.b16 %v78
  %v712 = vunpack.c.l.b16 %v79
  %v713 = vunpack.c.h.b16 %v79
  %v714 = vunpack.c.l.b16 %v80
  %v715 = vunpack.c.l.b16 %v81
  %v716 = vunpack.c.h.b16 %v81
  %v717 = vunpack.c.l.b16 %v82
  %v718 = vunpack.c.l.b16 %v83
  %v719 = vunpack.c.h.b16 %v83
  %v720 = vunpack.c.l.b16 %v84
  %v721 = vunpack.c.l.b16 %v85
  %v722 = vunpack.c.h.b16 %v85
  %v723 = vunpack.c.l.b16 %v86
  %v724 = vunpack.c.l.b16 %v87
  %v725 = vunpack.c.h.b16 %v87
  %v726 = vunpack.c.l.b16 %v88
  %v727 = vunpack.c.l.b16 %v89
  %v728 = vunpack.c.h.b16 %v89
  %v729 = vunpack.c.l.b16 %v90
  %v730 = vunpack.c.l.b16 %v91
  %v731 = vunpack.c.h.b16 %v91
  %v732 = vunpack.c.l.b16 %v92
  %v733 = vunpack.c.l.b16 %v93
  %v734 = vunpack.c.h.b16 %v93
  %v735 = vunpack.c.l.b16 %v94
  %v736 = vunpack.c.l.b16 %v95
  %v737 = vunpack.c.h.b16 %v95
  %v738 = vunpack.c.l.b16 %v96
  %v739 = vunpack.c.l.b16 %v97
  %v740 = vunpack.c.h.b16 %v97
  %v741 = vunpack.c.l.b16 %v98
  %v742 = vunpack.c.l.b16 %v99
  %v743 = vunpack.c.h.b16 %v99
  %v744 = vunpack.c.l.b16 %v100
  %v745 = vunpack.c.l.b16 %v101
  %v746 = vunpack.c.h.b16 %v101
  %v747 = vunpack.c.l.b16 %v102
  %v748 = vunpack.c.l.b16 %v103
  %v749 = vunpack.c.h.b16 %v103
  %v750 = vunpack.c.l.b16 %v104
  %v751 = vunpack.c.l.b16 %v105
  %v752 = vunpack.c.h.b16 %v105
  %v753 = vunpack.c.l.b16 %v106
  %v754 = vunpack.c.l.b16 %v107
  %v755 = vunpack.c.h.b16 %v107
  %v756 = vunpack.c.l.b16 %v108
  %v757 = vunpack.c.l.b16 %v109
  %v758 = vunpack.c.h.b16 %v109
  %v759 = vunpack.c.l.b16 %v110
  %v760 = vunpack.c.l.b16 %v111
  %v761 = vunpack.c.h.b16 %v111
  %v762 = vunpack.c.l.b16 %v112
  %v763 = vunpack.c.l.b16 %v113
  %v764 = vunpack.c.h.b16 %v113
  %v765 = vunpack.c.l.b16 %v114
  %v766 = vunpack.c.l.b16 %v115
  %v767 = vunpack.c.h.b16 %v115
  %v768 = vunpack.c.l.b16 %v116
  %v769 = vunpack.c.l.b16 %v117
  %v770 = vunpack.c.h.b16 %v117
  %v771 = vunpack.c.l.b16 %v118
  %v772 = vunpack.c.l.b16 %v119
  %v773 = vunpack.c.h.b16 %v119
  %v774 = vunpack.c.l.b16 %v120
  %v775 = vunpack.c.l.b16 %v121
  %v776 = vunpack.c.h.b16 %v121
  %v777 = vunpack.c.l.b16 %v122
  %v778 = vunpack.c.l.b16 %v123
  %v779 = vunpack.c.h.b16 %v123
  %v780 = vunpack.c.l.b16 %v124
  %v781 = vunpack.c.l.b16 %v125
  %v782 = vunpack.c.h.b16 %v125
  %v783 = vunpack.c.l.b16 %v126
  %v784 = vunpack.c.l.b16 %v127
  %v785 = vunpack.c.h.b16 %v127
  %v786 = vunpack.c.l.b16 %v128
  %v787 = vunpack.c.l.b16 %v129
  %v788 = vunpack.c.h.b16 %v129
  %v789 = vunpack.c.l.b16 %v130
  %v790 = vunpack.c.l.b16 %v131
  %v791 = vunpack.c.h.b16 %v131
  %v792 = vunpack.c.l.b16 %v132
  %v793 = vunpack.c.l.b16 %v133
  %v794 = vunpack.c.h.b16 %v133
  %v795 = vunpack.c.l.b16 %v134
  %v796 = vunpack.c.l.b16 %v135
  %v797 = vunpack.c.h.b16 %v135
  %v798 = vunpack.c.l.b16 %v136
  %v799 = vunpack.c.l.b16 %v137
  %v800 = vunpack.c.h.b16 %v137
  %v801 = vunpack.c.l.b16 %v138
  %v802 = vunpack.c.l.b16 %v139
  %v803 = vunpack.c.h.b16 %v139
  %v804 = vunpack.c.l.b16 %v140
  %v805 = vunpack.c.l.b16 %v141
  %v806 = vunpack.c.h.b16 %v141
  %v807 = vunpack.c.l.b16 %v142
  %v808 = vunpack.c.l.b16 %v143
  %v809 = vunpack.c.h.b16 %v143
  %v810 = vunpack.c.l.b16 %v144
  %v811 = vunpack.c.l.b16 %v145
  %v812 = vunpack.c.h.b16 %v145
  %v813 = vunpack.c.l.b16 %v146
  %v814 = vunpack.c.l.b16 %v147
  %v815 = vunpack.c.h.b16 %v147
  %v816 = vunpack.c.l.b16 %v148
  %v817 = vunpack.c.l.b16 %v149
  %v818 = vunpack.c.h.b16 %v149
  %v819 = vunpack.c.l.b16 %v150
  %v820 = vunpack.c.l.b16 %v151
  %v821 = vunpack.c.h.b16 %v151
  %v822 = vunpack.c.l.b16 %v152
  %v823 = vunpack.c.l.b16 %v153
  %v824 = vunpack.c.h.b16 %v153
  %v825 = vunpack.c.l.b16 %v154
  %v826 = vunpack.c.l.b16 %v155
  %v827 = vunpack.c.h.b16 %v155
  %v828 = vunpack.c.l.b16 %v156
  %v829 = vunpack.c.l.b16 %v157
  %v830 = vunpack.c.h.b16 %v157
  %v831 = vunpack.c.l.b16 %v158
  %v832 = vunpack.c.l.b16 %v159
  %v833 = vunpack.c.h.b16 %v159
  %v834 = vunpack.c.l.b16 %v160
  %v835 = vunpack.c.l.b16 %v161
  %v836 = vunpack.c.h.b16 %v161
  %v837 = vunpack.c.l.b16 %v162
  %v838 = vunpack.c.l.b16 %v163
  %v839 = vunpack.c.h.b16 %v163
  %v840 = vunpack.c.l.b16 %v164
  %v841 = vunpack.c.l.b16 %v165
  %v842 = vunpack.c.h.b16 %v165
  %v843 = vunpack.c.l.b16 %v166
  %v844 = vunpack.c.l.b16 %v167
  %v845 = vunpack.c.h.b16 %v167
  %v846 = vunpack.c.l.b16 %v168
  %v847 = vunpack.c.l.b16 %v169
  %v848 = vunpack.c.h.b16 %v169
  %v849 = vunpack.c.l.b16 %v170
  %v850 = vunpack.c.l.b16 %v171
  %v851 = vunpack.c.h.b16 %v171
  %v852 = vunpack.c.l.b16 %v172
  %v853 = vunpack.c.l.b16 %v173
  %v854 = vunpack.c.h.b16 %v173
  %v855 = vunpack.c.l.b16 %v174
  %v856 = vunpack.c.l.b16 %v175
  %v857 = vunpack.c.h.b16 %v175
  %v858 = vunpack.c.l.b16 %v176
  %v859 = vunpack.c.l.b16 %v177
  %v860 = vunpack.c.h.b16 %v177
  %v861 = vunpack.c.l.b16 %v178
  %v862 = vunpack.c.l.b16 %v179
  %v863 = vunpack.c.h.b16 %v179
  %v864 = vunpack.c.l.b16 %v180
  %v865 = vunpack.c.l.b16 %v181
  %v866 = vunpack.c.h.b16 %v181
  %v867 = vunpack.c.l.b16 %v182
  %v868 = vunpack.c.l.b16 %v183
  %v869 = vunpack.c.h.b16 %v183
  %v870 = vunpack.c.l.b16 %v184
  %v871 = vunpack.c.l.b16 %v185
  %v872 = vunpack.c.h.b16 %v185
  %v873 = vunpack.c.l.b16 %v186
  %v874 = vunpack.c.l.b16 %v187
  %v875 = vunpack.c.h.b16 %v187
  %v876 = vunpack.c.l.b16 %v188
  %v877 = vunpack.c.l.b16 %v189
  %v878 = vunpack.c.h.b16 %v189
  %v879 = vunpack.c.l.b16 %v190
  %v880 = vunpack.c.l.b16 %v191
  %v881 = vunpack.c.h.b16 %v191
  %v882 = vunpack.c.l.b16 %v192
  %v883 = vunpack.c.l.b16 %v193
  %v884 = vunpack.c.h.b16 %v193
  %v885 = vunpack.c.l.b16 %v194
  %v886 = vunpack.c.l.b16 %v195
  %v887 = vunpack.c.h.b16 %v195
  %v888 = vunpack.c.l.b16 %v196
  %v889 = vunpack.c.l.b16 %v197
  %v890 = vunpack.c.h.b16 %v197
  %v891 = vunpack.c.l.b16 %v198
  %v892 = vunpack.c.l.b16 %v199
  %v893 = vunpack.c.h.b16 %v199
  %v894 = vunpack.c.l.b16 %v200
  %v895 = vunpack.c.l.b16 %v201
  %v896 = vunpack.c.h.b16 %v201
  %v897 = vunpack.c.l.b16 %v202
  %v898 = vunpack.c.l.b16 %v203
  %v899 = vunpack.c.h.b16 %v203
  %v900 = vunpack.c.l.b16 %v204
  %v901 = vunpack.c.l.b16 %v205
  %v902 = vunpack.c.h.b16 %v205
  %v903 = vunpack.c.l.b16 %v206
  %v904 = vunpack.c.l.b16 %v207
  %v905 = vunpack.c.h.b16 %v207
  %v906 = vunpack.c.l.b16 %v208
  %v907 = vunpack.c.l.b16 %v209
  %v908 = vunpack.c.h.b16 %v209
  %v909 = vunpack.c.l.b16 %v210
  %v910 = vunpack.c.l.b16 %v211
  %v911 = vunpack.c.h.b16 %v211
  %v912 = vunpack.c.l.b16 %v212
  %v913 = vunpack.c.l.b16 %v213
  %v914 = vunpack.c.h.b16 %v213
  %v915 = vunpack.c.l.b16 %v214
  %v916 = vunpack.c.l.b16 %v215
  %v917 = vunpack.c.h.b16 %v215
  %v918 = vunpack.c.l.b16 %v216
  %v919 = vunpack.c.l.b16 %v217
  %v920 = vunpack.c.h.b16 %v217
  %v921 = vunpack.c.l.b16 %v218
  %v922 = vunpack.c.l.b16 %v219
  %v923 = vunpack.c.h.b16 %v219
  %v924 = vunpack.c.l.b16 %v220
  %v925 = vunpack.c.l.b16 %v221
  %v926 = vunpack.c.h.b16 %v221
  %v927 = vunpack.c.l.b16 %v222
  %v928 = vunpack.c.l.b16 %v223
  %v929 = vunpack.c.h.b16 %v223
  %v930 = vunpack.c.l.b16 %v224
  %v931 = vunpack.c.l.b16 %v225
  %v932 = vunpack.c.h.b16 %v225
  %v933 = vunpack.c.l.b16 %v226
  %v934 = vunpack.c.l.b16 %v227
  %v935 = vunpack.c.h.b16 %v227
  %v936 = vunpack.c.l.b16 %v228
  %v937 = vunpack.c.l.b16 %v229
  %v938 = vunpack.c.h.b16 %v229
  %v939 = vunpack.c.l.b16 %v230
  %v940 = vunpack.c.l.b16 %v231
  %v941 = vunpack.c.h.b16 %v231
  %v942 = vunpack.c.l.b16 %v232
  %v943 = vunpack.c.l.b16 %v233
  %v944 = vunpack.c.h.b16 %v233
  %v945 = vunpack.c.l.b16 %v234
  %v946 = vunpack.c.l.b16 %v235
  %v947 = vunpack.c.h.b16 %v235
  %v948 = vunpack.c.l.b16 %v236
  %v949 = vunpack.c.l.b16 %v237
  %v950 = vunpack.c.h.b16 %v237
  %v951 = vunpack.c.l.b16 %v238
  %v952 = vunpack.c.l.b16 %v239
  %v953 = vunpack.c.h.b16 %v239
  %v954 = vunpack.c.l.b16 %v240
  %v955 = vunpack.c.l.b16 %v241
  %v956 = vunpack.c.h.b16 %v241
  %v957 = vunpack.c.l.b16 %v242
  %v958 = vunpack.c.l.b16 %v243
  %v959 = vunpack.c.h.b16 %v243
  %v960 = vunpack.c.l.b16 %v244
  %v961 = vunpack.c.l.b16 %v245
  %v962 = vunpack.c.h.b16 %v245
  %v963 = vunpack.c.l.b16 %v246
  %v964 = vunpack.c.l.b16 %v247
  %v965 = vunpack.c.h.b16 %v247
  %v966 = vunpack.c.l.b16 %v248
  %v967 = vunpack.c.l.b16 %v249
  %v968 = vunpack.c.h.b16 %v249
  %v969 = vunpack.c.l.b16 %v250
  %v970 = vunpack.c.l.b16 %v251
  %v971 = vunpack.c.h.b16 %v251
  %v972 = vunpack.c.l.b16 %v252
  %v973 = vunpack.c.l.b16 %v253
  %v974 = vunpack.c.h.b16 %v253
  %v975 = vunpack.c.l.b16 %v254
  %v976 = vunpack.c.l.b16 %v255
  %v977 = vunpack.c.h.b16 %v255
  %v978 = vunpack.c.l.b16 %v256
  %v979 = vunpack.c.l.b16 %v257
  %v980 = vunpack.c.h.b16 %v257
  %v981 = vunpack.c.l.b16 %v258
  %v982 = vunpack.c.l.b16 %v259
  %v983 = vunpack.c.h.b16 %v259
  %v984 = vunpack.c.l.b16 %v260
  %v985 = vunpack.c.l.b16 %v261
  %v986 = vunpack.c.h.b16 %v261
  %v987 = vunpack.c.l.b16 %v262
  %v988 = vunpack.c.l.b16 %v263
  %v989 = vunpack.c.h.b16 %v263
  %v990 = vunpack.c.l.b16 %v264
  %v991 = vunpack.c.l.b16 %v265
  %v992 = vunpack.c.h.b16 %v265
  %v993 = vunpack.c.l.b16 %v266
  %v994 = vunpack.c.l.b16 %v267
  %v995 = vunpack.c.h.b16 %v267
  %v996 = vunpack.c.l.b16 %v268
  %v997 = vunpack.c.l.b16 %v269
  %v998 = vunpack.c.h.b16 %v269
  %v999 = vunpack.c.l.b16 %v270
  %v1000 = vunpack.c.l.b16 %v271
  %v1001 = vunpack.c.h.b16 %v271
  %v1002 = vunpack.c.l.b16 %v272
  %v1003 = vunpack.c.l.b16 %v273
  %v1004 = vunpack.c.h.b16 %v273
  %v1005 = vunpack.c.l.b16 %v274
  %v1006 = vunpack.c.l.b16 %v275
  %v1007 = vunpack.c.h.b16 %v275
  %v1008 = vunpack.c.l.b16 %v276
  %v1009 = vunpack.c.l.b16 %v277
  %v1010 = vunpack.c.h.b16 %v277
  %v1011 = vunpack.c.l.b16 %v278
  %v1012 = vunpack.c.l.b16 %v279
  %v1013 = vunpack.c.h.b16 %v279
  %v1014 = vunpack.c.l.b16 %v280
  %v1015 = vunpack.c.l.b16 %v281
  %v1016 = vunpack.c.h.b16 %v281
  %v1017 = vunpack.c.l.b16 %v282
  %v1018 = vunpack.c.l.b16 %v283
  %v1019 = vunpack.c.h.b16 %v283
  %v1020 = vunpack.c.l.b16 %v284
  %v1021 = vunpack.c.l.b16 %v285
  %v1022 = vunpack.c.h.b16 %v285
  %v1023 = vunpack.c.l.b16 %v286
  %v1024 = vunpack.c.l.b16 %v287
  %v1025 = vunpack.c.h.b16 %v287
  %v1026 = vunpack.c.l.b16 %v288
  %v1027 = vunpack.c.l.b16 %v289
  %v1028 = vunpack.c.h.b16 %v289
  %v1029 = vunpack.c.l.b16 %v290
  %v1030 = vunpack.c.l.b16 %v291
  %v1031 = vunpack.c.h.b16 %v291
  %v1032 = vunpack.c.l.b16 %v292
  %v1033 = vunpack.c.l.b16 %v293
  %v1034 = vunpack.c.h.b16 %v293
  %v1035 = vunpack.c.l.b16 %v294
  %v1036 = vunpack.c.l.b16 %v295
  %v1037 = vunpack.c.h.b16 %v295
  %v1038 = vunpack.c.l.b16 %v296
  %v1039 = vunpack.c.l.b16 %v297
  %v1040 = vunpack.c.h.b16 %v297
  %v1041 = vunpack.c.l.b16 %v298
  %v1042 = vunpack.c.l.b16 %v299
  %v1043 = vunpack.c.h.b16 %v299
  %v1044 = vunpack.c.l.b16 %v300
  %v1045 = vunpack.c.l.b16 %v301
  %v1046 = vunpack.c.h.b16 %v301
  %v1047 = vunpack.c.l.b16 %v302
  %v1048 = vunpack.c.l.b16 %v303
  %v1049 = vunpack.c.h.b16 %v303
  %v1050 = vunpack.c.l.b16 %v304
  %v1051 = vunpack.c.l.b16 %v305
  %v1052 = vunpack.c.h.b16 %v305
  %v1053 = vunpack.c.l.b16 %v306
  %v1054 = vunpack.c.l.b16 %v307
  %v1055 = vunpack.c.h.b16 %v307
  %v1056 = vunpack.c.l.b16 %v308
  %v1057 = vunpack.c.l.b16 %v309
  %v1058 = vunpack.c.h.b16 %v309
  %v1059 = vunpack.c.l.b16 %v310
  %v1060 = vunpack.c.l.b16 %v311
  %v1061 = vunpack.c.h.b16 %v311
  %v1062 = vunpack.c.l.b16 %v312
  %v1063 = vunpack.c.l.b16 %v313
  %v1064 = vunpack.c.h.b16 %v313
  %v1065 = vunpack.c.l.b16 %v314
  %v1066 = vunpack.c.l.b16 %v315
  %v1067 = vunpack.c.h.b16 %v315
  %v1068 = vunpack.c.l.b16 %v316
  %v1069 = vunpack.c.l.b16 %v317
  %v1070 = vunpack.c.h.b16 %v317
  %v1071 = vunpack.c.l.b16 %v318
  %v1072 = vunpack.c.l.b16 %v319
  %v1073 = vunpack.c.h.b16 %v319
  %v1074 = vunpack.c.l.b16 %v320
  %v1075 = vunpack.c.l.b16 %v321
  %v1076 = vunpack.c.h.b16 %v321
  %v1077 = vunpack.c.l.b16 %v322
  %v1078 = vunpack.c.l.b16 %v323
  %v1079 = vunpack.c.h.b16 %v323
  %v1080 = vunpack.c.l.b16 %v324
  %v1081 = vunpack.c.l.b16 %v325
  %v1082 = vunpack.c.h.b16 %v325
  %v1083 = vunpack.c.l.b16 %v326
  %v1084 = vunpack.c.l.b16 %v327
  %v1085 = vunpack.c.h.b16 %v327
  %v1086 = vunpack.c.l.b16 %v328
  %v1087 = vunpack.c.l.b16 %v329
  %v1088 = vunpack.c.h.b16 %v329
  %v1089 = vunpack.c.l.b16 %v330
  %v1090 = vunpack.c.l.b16 %v331
  %v1091 = vunpack.c.h.b16 %v331
  %v1092 = vunpack.c.l.b16 %v332
  %v1093 = vunpack.c.l.b16 %v333
  %v1094 = vunpack.c.h.b16 %v333
  %v1095 = vunpack.c.l.b16 %v334
  %v1096 = vunpack.c.l.b16 %v335
  %v1097 = vunpack.c.h.b16 %v335
  %v1098 = vunpack.c.l.b16 %v336
  %v1099 = vunpack.c.l.b16 %v337
  %v1100 = vunpack.c.h.b16 %v337
  %v1101 = vunpack.c.l.b16 %v338
  %v1102 = vunpack.c.l.b16 %v339
  %v1103 = vunpack.c.h.b16 %v339
  %v1104 = vunpack.c.l.b16 %v340
  %v1105 = vunpack.c.l.b16 %v341
  %v1106 = vunpack.c.h.b16 %v341
  %v1107 = vunpack.c.l.b16 %v342
  %v1108 = vunpack.c.l.b16 %v343
  %v1109 = vunpack.c.h.b16 %v343
  %v1110 = vunpack.c.l.b16 %v344
  %v1111 = vunpack.c.l.b16 %v345
  %v1112 = vunpack.c.h.b16 %v345
  %v1113 = vunpack.c.l.b16 %v346
  %v1114 = vunpack.c.l.b16 %v347
  %v1115 = vunpack.c.h.b16 %v347
  %v1116 = vunpack.c.l.b16 %v348
  %v1117 = vunpack.c.l.b16 %v349
  %v1118 = vunpack.c.h.b16 %v349
  %v1119 = vunpack.c.l.b16 %v350
  %v1120 = vunpack.c.l.b16 %v351
  %v1121 = vunpack.c.h.b16 %v351
  %v1122 = vunpack.c.l.b16 %v352
  %v1123 = vunpack.c.l.b16 %v353
  %v1124 = vunpack.c.h.b16 %v353
  %v1125 = vunpack.c.l.b16 %v354
  %v1126 = vunpack.c.l.b16 %v355
  %v1127 = vunpack.c.h.b16 %v355
  %v1128 = vunpack.c.l.b16 %v356
  %v1129 = vunpack.c.l.b16 %v357
  %v1130 = vunpack.c.h.b16 %v357
  %v1131 = vunpack.c.l.b16 %v358
  %v1132 = vunpack.c.l.b16 %v359
  %v1133 = vunpack.c.h.b16 %v359
  %v1134 = vunpack.c.l.b16 %v360
  %v1135 = vunpack.c.l.b16 %v361
  %v1136 = vunpack.c.h.b16 %v361
  %v1137 = vunpack.c.l.b16 %v362
  %v1138 = vunpack.c.l.b16 %v363
  %v1139 = vunpack.c.h.b16 %v363
  %v1140 = vunpack.c.l.b16 %v364
  %v1141 = vunpack.c.l.b16 %v365
  %v1142 = vunpack.c.h.b16 %v365
  %v1143 = vunpack.c.l.b16 %v366
  %v1144 = vunpack.c.l.b16 %v367
  %v1145 = vunpack.c.h.b16 %v367
  %v1146 = vunpack.c.l.b16 %v368
  %v1147 = vpack.c.b16 %v688, %v685
  %v1148 = vpack.c.b16 %v689, %v686
  %v1149 = vpack.c.b16 %v690, %v687
  %v1150 = vpack.c.b16 %v694, %v691
  %v1151 = vpack.c.b16 %v695, %v692
  %v1152 = vpack.c.b16 %v696, %v693
  %v1153 = vpack.c.b16 %v700, %v697
  %v1154 = vpack.c.b16 %v701, %v698
  %v1155 = vpack.c.b16 %v702, %v699
  %v1156 = vpack.c.b16 %v706, %v703
  %v1157 = vpack.c.b16 %v707, %v704
  %v1158 = vpack.c.b16 %v708, %v705
  %v1159 = vpack.c.b16 %v712, %v709
  %v1160 = vpack.c.b16 %v713, %v710
  %v1161 = vpack.c.b16 %v714, %v711
  %v1162 = vpack.c.b16 %v718, %v715
  %v1163 = vpack.c.b16 %v719, %v716
  %v1164 = vpack.c.b16 %v720, %v717
  %v1165 = vpack.c.b16 %v724, %v721
  %v1166 = vpack.c.b16 %v725, %v722
  %v1167 = vpack.c.b16 %v726, %v723
  %v1168 = vpack.c.b16 %v730, %v727
  %v1169 = vpack.c.b16 %v731, %v728
  %v1170 = vpack.c.b16 %v732, %v729
  %v1171 = vpack.c.b16 %v736, %v733
  %v1172 = vpack.c.b16 %v737, %v734
  %v1173 = vpack.c.b16 %v738, %v735
  %v1174 = vpack.c.b16 %v742, %v739
  %v1175 = vpack.c.b16 %v743, %v740
  %v1176 = vpack.c.b16 %v744, %v741
  %v1177 = vpack.c.b16 %v748, %v745
  %v1178 = vpack.c.b16 %v749, %v746
  %v1179 = vpack.c.b16 %v750, %v747
  %v1180 = vpack.c.b16 %v754, %v751
  %v1181 = vpack.c.b16 %v755, %v752
  %v1182 = vpack.c.b16 %v756, %v753
  %v1183 = vpack.c.b16 %v760, %v757
  %v1184 = vpack.c.b16 %v761, %v758
  %v1185 = vpack.c.b16 %v762, %v759
  %v1186 = vpack.c.b16 %v766, %v763
  %v1187 = vpack.c.b16 %v767, %v764
  %v1188 = vpack.c.b16 %v768, %v765
  %v1189 = vpack.c.b16 %v772, %v769
  %v1190 = vpack.c.b16 %v773, %v770
  %v1191 = vpack.c.b16 %v774, %v771
  %v1192 = vpack.c.b16 %v778, %v775
  %v1193 = vpack.c.b16 %v779, %v776
  %v1194 = vpack.c.b16 %v780, %v777
  %v1195 = vpack.c.b16 %v784, %v781
  %v1196 = vpack.c.b16 %v785, %v782
  %v1197 = vpack.c.b16 %v786, %v783
  %v1198 = vpack.c.b16 %v790, %v787
  %v1199 = vpack.c.b16 %v791, %v788
  %v1200 = vpack.c.b16 %v792, %v789
  %v1201 = vpack.c.b16 %v796, %v793
  %v1202 = vpack.c.b16 %v797, %v794
  %v1203 = vpack.c.b16 %v798, %v795
  %v1204 = vpack.c.b16 %v802, %v799
  %v1205 = vpack.c.b16 %v803, %v800
  %v1206 = vpack.c.b16 %v804, %v801
  %v1207 = vpack.c.b16 %v808, %v805
  %v1208 = vpack.c.b16 %v809, %v806
  %v1209 = vpack.c.b16 %v810, %v807
  %v1210 = vpack.c.b16 %v814, %v811
  %v1211 = vpack.c.b16 %v815, %v812
  %v1212 = vpack.c.b16 %v816, %v813
  %v1213 = vpack.c.b16 %v820, %v817
  %v1214 = vpack.c.b16 %v821, %v818
  %v1215 = vpack.c.b16 %v822, %v819
  %v1216 = vpack.c.b16 %v826, %v823
  %v1217 = vpack.c.b16 %v827, %v824
  %v1218 = vpack.c.b16 %v828, %v825
  %v1219 = vpack.c.b16 %v832, %v829
  %v1220 = vpack.c.b16 %v833, %v830
  %v1221 = vpack.c.b16 %v834, %v831
  %v1222 = vpack.c.b16 %v838, %v835
  %v1223 = vpack.c.b16 %v839, %v836
  %v1224 = vpack.c.b16 %v840, %v837
  %v1225 = vpack.c.b16 %v844, %v841
  %v1226 = vpack.c.b16 %v845, %v842
  %v1227 = vpack.c.b16 %v846, %v843
  %v1228 = vpack.c.b16 %v850, %v847
  %v1229 = vpack.c.b16 %v851, %v848
  %v1230 = vpack.c.b16 %v852, %v849
  %v1231 = vpack.c.b16 %v856, %v853
  %v1232 = vpack.c.b16 %v857, %v854
  %v1233 = vpack.c.b16 %v858, %v855
  %v1234 = vpack.c.b16 %v862, %v859
  %v1235 = vpack.c.b16 %v863, %v860
  %v1236 = vpack.c.b16 %v864, %v861
  %v1237 = vpack.c.b16 %v868, %v865
  %v1238 = vpack.c.b16 %v869, %v866
  %v1239 = vpack.c.b16 %v870, %v867
  %v1240 = vpack.c.b16 %v874, %v871
  %v1241 = vpack.c.b16 %v875, %v872
  %v1242 = vpack.c.b16 %v876, %v873
  %v1243 = vpack.c.b16 %v880, %v877
  %v1244 = vpack.c.b16 %v881, %v878
  %v1245 = vpack.c.b16 %v882, %v879
  %v1246 = vpack.c.b16 %v886, %v883
  %v1247 = vpack.c.b16 %v887, %v884
  %v1248 = vpack.c.b16 %v888, %v885
  %v1249 = vpack.c.b16 %v892, %v889
  %v1250 = vpack.c.b16 %v893, %v890
  %v1251 = vpack.c.b16 %v894, %v891
  %v1252 = vpack.c.b16 %v898, %v895
  %v1253 = vpack.c.b16 %v899, %v896
  %v1254 = vpack.c.b16 %v900, %v897
  %v1255 = vpack.c.b16 %v904, %v901
  %v1256 = vpack.c.b16 %v905, %v902
  %v1257 = vpack.c.b16 %v906, %v903
  %v1258 = vpack.c.b16 %v910, %v907
  %v1259 = vpack.c.b16 %v911, %v908
  %v1260 = vpack.c.b16 %v912, %v909
  %v1261 = vpack.c.b16 %v916, %v913
  %v1262 = vpack.c.b16 %v917, %v914
  %v1263 = vpack.c.b16 %v918, %v915
  %v1264 = vpack.c.b16 %v922, %v919
  %v1265 = vpack.c.b16 %v923, %v920
  %v1266 = vpack.c.b16 %v924, %v921
  %v1267 = vpack.c.b16 %v928, %v925
  %v1268 = vpack.c.b16 %v929, %v926
  %v1269 = vpack.c.b16 %v930, %v927
  %v1270 = vpack.c.b16 %v934, %v931
  %v1271 = vpack.c.b16 %v935, %v932
  %v1272 = vpack.c.b16 %v936, %v933
  %v1273 = vpack.c.b16 %v940, %v937
  %v1274 = vpack.c.b16 %v941, %v938
  %v1275 = vpack.c.b16 %v942, %v939
  %v1276 = vpack.c.b16 %v946, %v943
  %v1277 = vpack.c.b16 %v947, %v944
  %v1278 = vpack.c.b16 %v948, %v945
  %v1279 = vpack.c.b16 %v952, %v949
  %v1280 = vpack.c.b16 %v953, %v950
  %v1281 = vpack.c.b16 %v954, %v951
  %v1282 = vpack.c.b16 %v958, %v955
  %v1283 = vpack.c.b16 %v959, %v956
  %v1284 = vpack.c.b16 %v960, %v957
  %v1285 = vpack.c.b16 %v964, %v961
  %v1286 = vpack.c.b16 %v965, %v962
  %v1287 = vpack.c.b16 %v966, %v963
  %v1288 = vpack.c.b16 %v970, %v967
  %v1289 = vpack.c.b16 %v971, %v968
  %v1290 = vpack.c.b16 %v972, %v969
  %v1291 = vpack.c.b16 %v976, %v973
  %v1292 = vpack.c.b16 %v977, %v974
  %v1293 = vpack.c.b16 %v978, %v975
  %v1294 = vpack.c.b16 %v982, %v979
  %v1295 = vpack.c.b16 %v983, %v980
  %v1296 = vpack.c.b16 %v984, %v981
  %v1297 = vpack.c.b16 %v988, %v985
  %v1298 = vpack.c.b16 %v989, %v986
  %v1299 = vpack.c.b16 %v990, %v987
  %v1300 = vpack.c.b16 %v994, %v991
  %v1301 = vpack.c.b16 %v995, %v992
  %v1302 = vpack.c.b16 %v996, %v993
  %v1303 = vpack.c.b16 %v1000, %v997
  %v1304 = vpack.c.b16 %v1001, %v998
  %v1305 = vpack.c.b16 %v1002, %v999
  %v1306 = vpack.c.b16 %v1006, %v1003
  %v1307 = vpack.c.b16 %v1007, %v1004
  %v1308 = vpack.c.b16 %v1008, %v1005
  %v1309 = vpack.c.b16 %v1012, %v1009
  %v1310 = vpack.c.b16 %v1013, %v1010
  %v1311 = vpack.c.b16 %v1014, %v1011
  %v1312 = vpack.c.b16 %v1018, %v1015
  %v1313 = vpack.c.b16 %v1019, %v1016
  %v1314 = vpack.c.b16 %v1020, %v1017
  %v1315 = vpack.c.b16 %v1024, %v1021
  %v1316 = vpack.c.b16 %v1025, %v1022
  %v1317 = vpack.c.b16 %v1026, %v1023
  %v1318 = vpack.c.b16 %v1030, %v1027
  %v1319 = vpack.c.b16 %v1031, %v1028
  %v1320 = vpack.c.b16 %v1032, %v1029
  %v1321 = vpack.c.b16 %v1036, %v1033
  %v1322 = vpack.c.b16 %v1037, %v1034
  %v1323 = vpack.c.b16 %v1038, %v1035
  %v1324 = vpack.c.b16 %v1042, %v1039
  %v1325 = vpack.c.b16 %v1043, %v1040
  %v1326 = vpack.c.b16 %v1044, %v1041
  %v1327 = vpack.c.b16 %v1048, %v1045
  %v1328 = vpack.c.b16 %v1049, %v1046
  %v1329 = vpack.c.b16 %v1050, %v1047
  %v1330 = vpack.c.b16 %v1054, %v1051
  %v1331 = vpack.c.b16 %v1055, %v1052
  %v1332 = vpack.c.b16 %v1056, %v1053
  %v1333 = vpack.c.b16 %v1060, %v1057
  %v1334 = vpack.c.b16 %v1061, %v1058
  %v1335 = vpack.c.b16 %v1062, %v1059
  %v1336 = vpack.c.b16 %v1066, %v1063
  %v1337 = vpack.c.b16 %v1067, %v1064
  %v1338 = vpack.c.b16 %v1068, %v1065
  %v1339 = vpack.c.b16 %v1072, %v1069
  %v1340 = vpack.c.b16 %v1073, %v1070
  %v1341 = vpack.c.b16 %v1074, %v1071
  %v1342 = vpack.c.b16 %v1078, %v1075
  %v1343 = vpack.c.b16 %v1079, %v1076
  %v1344 = vpack.c.b16 %v1080, %v1077
  %v1345 = vpack.c.b16 %v1084, %v1081
  %v1346 = vpack.c.b16 %v1085, %v1082
  %v1347 = vpack.c.b16 %v1086, %v1083
  %v1348 = vpack.c.b16 %v1090, %v1087
  %v1349 = vpack.c.b16 %v1091, %v1088
  %v1350 = vpack.c.b16 %v1092, %v1089
  %v1351 = vpack.c.b16 %v1096, %v1093
  %v1352 = vpack.c.b16 %v1097, %v1094
  %v1353 = vpack.c.b16 %v1098, %v1095
  %v1354 = vpack.c.b16 %v1102, %v1099
  %v1355 = vpack.c.b16 %v1103, %v1100
  %v1356 = vpack.c.b16 %v1104, %v1101
  %v1357 = vpack.c.b16 %v1108, %v1105
  %v1358 = vpack.c.b16 %v1109, %v1106
  %v1359 = vpack.c.b16 %v1110, %v1107
  %v1360 = vpack.c.b16 %v1114, %v1111
  %v1361 = vpack.c.b16 %v1115, %v1112
  %v1362 = vpack.c.b16 %v1116, %v1113
  %v1363 = vpack.c.b16 %v1120, %v1117
  %v1364 = vpack.c.b16 %v1121, %v1118
  %v1365 = vpack.c.b16 %v1122, %v1119
  %v1366 = vpack.c.b16 %v1126, %v1123
  %v1367 = vpack.c.b16 %v1127, %v1124
  %v1368 = vpack.c.b16 %v1128, %v1125
  %v1369 = vpack.c.b16 %v1132, %v1129
  %v1370 = vpack.c.b16 %v1133, %v1130
  %v1371 = vpack.c.b16 %v1134, %v1131
  %v1372 = vpack.c.b16 %v1138, %v1135
  %v1373 = vpack.c.b16 %v1139, %v1136
  %v1374 = vpack.c.b16 %v1140, %v1137
  %v1375 = vpack.c.b16 %v1144, %v1141
  %v1376 = vpack.c.b16 %v1145, %v1142
  %v1377 = vpack.c.b16 %v1146, %v1143
  %vm1609 = vcmask 654336
  %v1611 = vsel %vm1609, %v60, 0
  %1613 = vmatpush.bf16.msra.mxu0 %v1168
  %1614 = vmatpush.bf16.msra.mxu0 %v1165
  %1615 = vmatpush.bf16.msra.mxu0 %v1162
  %1616 = vmatpush.bf16.msra.mxu0 %v1159
  %1617 = vmatpush.bf16.msra.mxu0 %v1156
  %1618 = vmatpush.bf16.msra.mxu0 %v1153
  %1619 = vmatpush.bf16.msra.mxu0 %v1150
  %1620 = vmatpush.bf16.msra.mxu0 %v1147
  %1621 = vmatmul.bf16.gmra.mxu0 %v51
  %v1622 = vpop.f32.mrf.mxu0
  %v1623 = vadd.f32 %v371, %v1622
  %v1624 = vpop.f32.mrf.mxu0
  %1625 = vdwg.mxu0
  %1626 = vmatpush.bf16.msra.mxu0 %v1192
  %1627 = vmatpush.bf16.msra.mxu0 %v1189
  %1628 = vmatpush.bf16.msra.mxu0 %v1186
  %1629 = vmatpush.bf16.msra.mxu0 %v1183
  %1630 = vmatpush.bf16.msra.mxu0 %v1180
  %1631 = vmatpush.bf16.msra.mxu0 %v1177
  %1632 = vmatpush.bf16.msra.mxu0 %v1174
  %1633 = vmatpush.bf16.msra.mxu0 %v1171
  %1634 = vmatmul.bf16.gmra.mxu0 %v52
  %v1635 = vpop.f32.mrf.mxu0
  %v1636 = vadd.f32 %v1623, %v1635
  %v1637 = vpop.f32.mrf.mxu0
  %1638 = vdwg.mxu0
  %1639 = vmatpush.bf16.msra.mxu0 %v1216
  %1640 = vmatpush.bf16.msra.mxu0 %v1213
  %1641 = vmatpush.bf16.msra.mxu0 %v1210
  %1642 = vmatpush.bf16.msra.mxu0 %v1207
  %1643 = vmatpush.bf16.msra.mxu0 %v1204
  %1644 = vmatpush.bf16.msra.mxu0 %v1201
  %1645 = vmatpush.bf16.msra.mxu0 %v1198
  %1646 = vmatpush.bf16.msra.mxu0 %v1195
  %1647 = vmatmul.bf16.gmra.mxu0 %v53
  %v1648 = vpop.f32.mrf.mxu0
  %v1649 = vadd.f32 %v1636, %v1648
  %v1650 = vpop.f32.mrf.mxu0
  %1651 = vdwg.mxu0
  %1652 = vmatpush.bf16.msra.mxu0 %v1240
  %1653 = vmatpush.bf16.msra.mxu0 %v1237
  %1654 = vmatpush.bf16.msra.mxu0 %v1234
  %1655 = vmatpush.bf16.msra.mxu0 %v1231
  %1656 = vmatpush.bf16.msra.mxu0 %v1228
  %1657 = vmatpush.bf16.msra.mxu0 %v1225
  %1658 = vmatpush.bf16.msra.mxu0 %v1222
  %1659 = vmatpush.bf16.msra.mxu0 %v1219
  %1660 = vmatmul.bf16.gmra.mxu0 %v54
  %v1661 = vpop.f32.mrf.mxu0
  %v1662 = vadd.f32 %v1649, %v1661
  %v1663 = vpop.f32.mrf.mxu0
  %1664 = vdwg.mxu0
  %1665 = vmatpush.bf16.msra.mxu0 %v1264
  %1666 = vmatpush.bf16.msra.mxu0 %v1261
  %1667 = vmatpush.bf16.msra.mxu0 %v1258
  %1668 = vmatpush.bf16.msra.mxu0 %v1255
  %1669 = vmatpush.bf16.msra.mxu0 %v1252
  %1670 = vmatpush.bf16.msra.mxu0 %v1249
  %1671 = vmatpush.bf16.msra.mxu0 %v1246
  %1672 = vmatpush.bf16.msra.mxu0 %v1243
  %1673 = vmatmul.bf16.gmra.mxu0 %v55
  %v1674 = vpop.f32.mrf.mxu0
  %v1675 = vadd.f32 %v1662, %v1674
  %v1676 = vpop.f32.mrf.mxu0
  %1677 = vdwg.mxu0
  %1678 = vmatpush.bf16.msra.mxu0 %v1288
  %1679 = vmatpush.bf16.msra.mxu0 %v1285
  %1680 = vmatpush.bf16.msra.mxu0 %v1282
  %1681 = vmatpush.bf16.msra.mxu0 %v1279
  %1682 = vmatpush.bf16.msra.mxu0 %v1276
  %1683 = vmatpush.bf16.msra.mxu0 %v1273
  %1684 = vmatpush.bf16.msra.mxu0 %v1270
  %1685 = vmatpush.bf16.msra.mxu0 %v1267
  %1686 = vmatmul.bf16.gmra.mxu0 %v56
  %v1687 = vpop.f32.mrf.mxu0
  %v1688 = vadd.f32 %v1675, %v1687
  %v1689 = vpop.f32.mrf.mxu0
  %1690 = vdwg.mxu0
  %1691 = vmatpush.bf16.msra.mxu0 %v1312
  %1692 = vmatpush.bf16.msra.mxu0 %v1309
  %1693 = vmatpush.bf16.msra.mxu0 %v1306
  %1694 = vmatpush.bf16.msra.mxu0 %v1303
  %1695 = vmatpush.bf16.msra.mxu0 %v1300
  %1696 = vmatpush.bf16.msra.mxu0 %v1297
  %1697 = vmatpush.bf16.msra.mxu0 %v1294
  %1698 = vmatpush.bf16.msra.mxu0 %v1291
  %1699 = vmatmul.bf16.gmra.mxu0 %v57
  %v1700 = vpop.f32.mrf.mxu0
  %v1701 = vadd.f32 %v1688, %v1700
  %v1702 = vpop.f32.mrf.mxu0
  %1703 = vdwg.mxu0
  %1704 = vmatpush.bf16.msra.mxu0 %v1336
  %1705 = vmatpush.bf16.msra.mxu0 %v1333
  %1706 = vmatpush.bf16.msra.mxu0 %v1330
  %1707 = vmatpush.bf16.msra.mxu0 %v1327
  %1708 = vmatpush.bf16.msra.mxu0 %v1324
  %1709 = vmatpush.bf16.msra.mxu0 %v1321
  %1710 = vmatpush.bf16.msra.mxu0 %v1318
  %1711 = vmatpush.bf16.msra.mxu0 %v1315
  %1712 = vmatmul.bf16.gmra.mxu0 %v58
  %v1713 = vpop.f32.mrf.mxu0
  %v1714 = vadd.f32 %v1701, %v1713
  %v1715 = vpop.f32.mrf.mxu0
  %1716 = vdwg.mxu0
  %1717 = vmatpush.bf16.msra.mxu0 %v1360
  %1718 = vmatpush.bf16.msra.mxu0 %v1357
  %1719 = vmatpush.bf16.msra.mxu0 %v1354
  %1720 = vmatpush.bf16.msra.mxu0 %v1351
  %1721 = vmatpush.bf16.msra.mxu0 %v1348
  %1722 = vmatpush.bf16.msra.mxu0 %v1345
  %1723 = vmatpush.bf16.msra.mxu0 %v1342
  %1724 = vmatpush.bf16.msra.mxu0 %v1339
  %1725 = vmatmul.bf16.gmra.mxu0 %v59
  %v1726 = vpop.f32.mrf.mxu0
  %v1727 = vadd.f32 %v1714, %v1726
  %v1728 = vpop.f32.mrf.mxu0
  %1729 = vdwg.mxu0
  %1730 = vmatpush.bf16.msra.mxu0 0
  %1731 = vmatpush.bf16.msra.mxu0 0
  %1732 = vmatpush.bf16.msra.mxu0 0
  %1733 = vmatpush.bf16.msra.mxu0 %v1375
  %1734 = vmatpush.bf16.msra.mxu0 %v1372
  %1735 = vmatpush.bf16.msra.mxu0 %v1369
  %1736 = vmatpush.bf16.msra.mxu0 %v1366
  %1737 = vmatpush.bf16.msra.mxu0 %v1363
  %1738 = vmatmul.bf16.gmra.mxu0 %v1611
  %v1739 = vpop.f32.mrf.mxu0
  %v1740 = vadd.f32 %v1727, %v1739
  %v1741 = vpop.f32.mrf.mxu0
  %1742 = vdwg.mxu0
  %1743 = vmatpush.bf16.msra.mxu0 %v1169
  %1744 = vmatpush.bf16.msra.mxu0 %v1166
  %1745 = vmatpush.bf16.msra.mxu0 %v1163
  %1746 = vmatpush.bf16.msra.mxu0 %v1160
  %1747 = vmatpush.bf16.msra.mxu0 %v1157
  %1748 = vmatpush.bf16.msra.mxu0 %v1154
  %1749 = vmatpush.bf16.msra.mxu0 %v1151
  %1750 = vmatpush.bf16.msra.mxu0 %v1148
  %1751 = vmatmul.bf16.gmra.mxu0 %v51
  %v1752 = vpop.f32.mrf.mxu0
  %v1753 = vadd.f32 %v372, %v1752
  %v1754 = vpop.f32.mrf.mxu0
  %1755 = vdwg.mxu0
  %1756 = vmatpush.bf16.msra.mxu0 %v1193
  %1757 = vmatpush.bf16.msra.mxu0 %v1190
  %1758 = vmatpush.bf16.msra.mxu0 %v1187
  %1759 = vmatpush.bf16.msra.mxu0 %v1184
  %1760 = vmatpush.bf16.msra.mxu0 %v1181
  %1761 = vmatpush.bf16.msra.mxu0 %v1178
  %1762 = vmatpush.bf16.msra.mxu0 %v1175
  %1763 = vmatpush.bf16.msra.mxu0 %v1172
  %1764 = vmatmul.bf16.gmra.mxu0 %v52
  %v1765 = vpop.f32.mrf.mxu0
  %v1766 = vadd.f32 %v1753, %v1765
  %v1767 = vpop.f32.mrf.mxu0
  %1768 = vdwg.mxu0
  %1769 = vmatpush.bf16.msra.mxu0 %v1217
  %1770 = vmatpush.bf16.msra.mxu0 %v1214
  %1771 = vmatpush.bf16.msra.mxu0 %v1211
  %1772 = vmatpush.bf16.msra.mxu0 %v1208
  %1773 = vmatpush.bf16.msra.mxu0 %v1205
  %1774 = vmatpush.bf16.msra.mxu0 %v1202
  %1775 = vmatpush.bf16.msra.mxu0 %v1199
  %1776 = vmatpush.bf16.msra.mxu0 %v1196
  %1777 = vmatmul.bf16.gmra.mxu0 %v53
  %v1778 = vpop.f32.mrf.mxu0
  %v1779 = vadd.f32 %v1766, %v1778
  %v1780 = vpop.f32.mrf.mxu0
  %1781 = vdwg.mxu0
  %1782 = vmatpush.bf16.msra.mxu0 %v1241
  %1783 = vmatpush.bf16.msra.mxu0 %v1238
  %1784 = vmatpush.bf16.msra.mxu0 %v1235
  %1785 = vmatpush.bf16.msra.mxu0 %v1232
  %1786 = vmatpush.bf16.msra.mxu0 %v1229
  %1787 = vmatpush.bf16.msra.mxu0 %v1226
  %1788 = vmatpush.bf16.msra.mxu0 %v1223
  %1789 = vmatpush.bf16.msra.mxu0 %v1220
  %1790 = vmatmul.bf16.gmra.mxu0 %v54
  %v1791 = vpop.f32.mrf.mxu0
  %v1792 = vadd.f32 %v1779, %v1791
  %v1793 = vpop.f32.mrf.mxu0
  %1794 = vdwg.mxu0
  %1795 = vmatpush.bf16.msra.mxu0 %v1265
  %1796 = vmatpush.bf16.msra.mxu0 %v1262
  %1797 = vmatpush.bf16.msra.mxu0 %v1259
  %1798 = vmatpush.bf16.msra.mxu0 %v1256
  %1799 = vmatpush.bf16.msra.mxu0 %v1253
  %1800 = vmatpush.bf16.msra.mxu0 %v1250
  %1801 = vmatpush.bf16.msra.mxu0 %v1247
  %1802 = vmatpush.bf16.msra.mxu0 %v1244
  %1803 = vmatmul.bf16.gmra.mxu0 %v55
  %v1804 = vpop.f32.mrf.mxu0
  %v1805 = vadd.f32 %v1792, %v1804
  %v1806 = vpop.f32.mrf.mxu0
  %1807 = vdwg.mxu0
  %1808 = vmatpush.bf16.msra.mxu0 %v1289
  %1809 = vmatpush.bf16.msra.mxu0 %v1286
  %1810 = vmatpush.bf16.msra.mxu0 %v1283
  %1811 = vmatpush.bf16.msra.mxu0 %v1280
  %1812 = vmatpush.bf16.msra.mxu0 %v1277
  %1813 = vmatpush.bf16.msra.mxu0 %v1274
  %1814 = vmatpush.bf16.msra.mxu0 %v1271
  %1815 = vmatpush.bf16.msra.mxu0 %v1268
  %1816 = vmatmul.bf16.gmra.mxu0 %v56
  %v1817 = vpop.f32.mrf.mxu0
  %v1818 = vadd.f32 %v1805, %v1817
  %v1819 = vpop.f32.mrf.mxu0
  %1820 = vdwg.mxu0
  %1821 = vmatpush.bf16.msra.mxu0 %v1313
  %1822 = vmatpush.bf16.msra.mxu0 %v1310
  %1823 = vmatpush.bf16.msra.mxu0 %v1307
  %1824 = vmatpush.bf16.msra.mxu0 %v1304
  %1825 = vmatpush.bf16.msra.mxu0 %v1301
  %1826 = vmatpush.bf16.msra.mxu0 %v1298
  %1827 = vmatpush.bf16.msra.mxu0 %v1295
  %1828 = vmatpush.bf16.msra.mxu0 %v1292
  %1829 = vmatmul.bf16.gmra.mxu0 %v57
  %v1830 = vpop.f32.mrf.mxu0
  %v1831 = vadd.f32 %v1818, %v1830
  %v1832 = vpop.f32.mrf.mxu0
  %1833 = vdwg.mxu0
  %1834 = vmatpush.bf16.msra.mxu0 %v1337
  %1835 = vmatpush.bf16.msra.mxu0 %v1334
  %1836 = vmatpush.bf16.msra.mxu0 %v1331
  %1837 = vmatpush.bf16.msra.mxu0 %v1328
  %1838 = vmatpush.bf16.msra.mxu0 %v1325
  %1839 = vmatpush.bf16.msra.mxu0 %v1322
  %1840 = vmatpush.bf16.msra.mxu0 %v1319
  %1841 = vmatpush.bf16.msra.mxu0 %v1316
  %1842 = vmatmul.bf16.gmra.mxu0 %v58
  %v1843 = vpop.f32.mrf.mxu0
  %v1844 = vadd.f32 %v1831, %v1843
  %v1845 = vpop.f32.mrf.mxu0
  %1846 = vdwg.mxu0
  %1847 = vmatpush.bf16.msra.mxu0 %v1361
  %1848 = vmatpush.bf16.msra.mxu0 %v1358
  %1849 = vmatpush.bf16.msra.mxu0 %v1355
  %1850 = vmatpush.bf16.msra.mxu0 %v1352
  %1851 = vmatpush.bf16.msra.mxu0 %v1349
  %1852 = vmatpush.bf16.msra.mxu0 %v1346
  %1853 = vmatpush.bf16.msra.mxu0 %v1343
  %1854 = vmatpush.bf16.msra.mxu0 %v1340
  %1855 = vmatmul.bf16.gmra.mxu0 %v59
  %v1856 = vpop.f32.mrf.mxu0
  %v1857 = vadd.f32 %v1844, %v1856
  %v1858 = vpop.f32.mrf.mxu0
  %1859 = vdwg.mxu0
  %1860 = vmatpush.bf16.msra.mxu0 0
  %1861 = vmatpush.bf16.msra.mxu0 0
  %1862 = vmatpush.bf16.msra.mxu0 0
  %1863 = vmatpush.bf16.msra.mxu0 %v1376
  %1864 = vmatpush.bf16.msra.mxu0 %v1373
  %1865 = vmatpush.bf16.msra.mxu0 %v1370
  %1866 = vmatpush.bf16.msra.mxu0 %v1367
  %1867 = vmatpush.bf16.msra.mxu0 %v1364
  %1868 = vmatmul.bf16.gmra.mxu0 %v1611
  %v1869 = vpop.f32.mrf.mxu0
  %v1870 = vadd.f32 %v1857, %v1869
  %v1871 = vpop.f32.mrf.mxu0
  %1872 = vdwg.mxu0
  %1873 = vmatpush.bf16.msra.mxu0 %v1170
  %1874 = vmatpush.bf16.msra.mxu0 %v1167
  %1875 = vmatpush.bf16.msra.mxu0 %v1164
  %1876 = vmatpush.bf16.msra.mxu0 %v1161
  %1877 = vmatpush.bf16.msra.mxu0 %v1158
  %1878 = vmatpush.bf16.msra.mxu0 %v1155
  %1879 = vmatpush.bf16.msra.mxu0 %v1152
  %1880 = vmatpush.bf16.msra.mxu0 %v1149
  %1881 = vmatmul.bf16.gmra.mxu0 %v51
  %v1882 = vpop.f32.mrf.mxu0
  %v1883 = vadd.f32 %v373, %v1882
  %v1884 = vpop.f32.mrf.mxu0
  %1885 = vdwg.mxu0
  %1886 = vmatpush.bf16.msra.mxu0 %v1194
  %1887 = vmatpush.bf16.msra.mxu0 %v1191
  %1888 = vmatpush.bf16.msra.mxu0 %v1188
  %1889 = vmatpush.bf16.msra.mxu0 %v1185
  %1890 = vmatpush.bf16.msra.mxu0 %v1182
  %1891 = vmatpush.bf16.msra.mxu0 %v1179
  %1892 = vmatpush.bf16.msra.mxu0 %v1176
  %1893 = vmatpush.bf16.msra.mxu0 %v1173
  %1894 = vmatmul.bf16.gmra.mxu0 %v52
  %v1895 = vpop.f32.mrf.mxu0
  %v1896 = vadd.f32 %v1883, %v1895
  %v1897 = vpop.f32.mrf.mxu0
  %1898 = vdwg.mxu0
  %1899 = vmatpush.bf16.msra.mxu0 %v1218
  %1900 = vmatpush.bf16.msra.mxu0 %v1215
  %1901 = vmatpush.bf16.msra.mxu0 %v1212
  %1902 = vmatpush.bf16.msra.mxu0 %v1209
  %1903 = vmatpush.bf16.msra.mxu0 %v1206
  %1904 = vmatpush.bf16.msra.mxu0 %v1203
  %1905 = vmatpush.bf16.msra.mxu0 %v1200
  %1906 = vmatpush.bf16.msra.mxu0 %v1197
  %1907 = vmatmul.bf16.gmra.mxu0 %v53
  %v1908 = vpop.f32.mrf.mxu0
  %v1909 = vadd.f32 %v1896, %v1908
  %v1910 = vpop.f32.mrf.mxu0
  %1911 = vdwg.mxu0
  %1912 = vmatpush.bf16.msra.mxu0 %v1242
  %1913 = vmatpush.bf16.msra.mxu0 %v1239
  %1914 = vmatpush.bf16.msra.mxu0 %v1236
  %1915 = vmatpush.bf16.msra.mxu0 %v1233
  %1916 = vmatpush.bf16.msra.mxu0 %v1230
  %1917 = vmatpush.bf16.msra.mxu0 %v1227
  %1918 = vmatpush.bf16.msra.mxu0 %v1224
  %1919 = vmatpush.bf16.msra.mxu0 %v1221
  %1920 = vmatmul.bf16.gmra.mxu0 %v54
  %v1921 = vpop.f32.mrf.mxu0
  %v1922 = vadd.f32 %v1909, %v1921
  %v1923 = vpop.f32.mrf.mxu0
  %1924 = vdwg.mxu0
  %1925 = vmatpush.bf16.msra.mxu0 %v1266
  %1926 = vmatpush.bf16.msra.mxu0 %v1263
  %1927 = vmatpush.bf16.msra.mxu0 %v1260
  %1928 = vmatpush.bf16.msra.mxu0 %v1257
  %1929 = vmatpush.bf16.msra.mxu0 %v1254
  %1930 = vmatpush.bf16.msra.mxu0 %v1251
  %1931 = vmatpush.bf16.msra.mxu0 %v1248
  %1932 = vmatpush.bf16.msra.mxu0 %v1245
  %1933 = vmatmul.bf16.gmra.mxu0 %v55
  %v1934 = vpop.f32.mrf.mxu0
  %v1935 = vadd.f32 %v1922, %v1934
  %v1936 = vpop.f32.mrf.mxu0
  %1937 = vdwg.mxu0
  %1938 = vmatpush.bf16.msra.mxu0 %v1290
  %1939 = vmatpush.bf16.msra.mxu0 %v1287
  %1940 = vmatpush.bf16.msra.mxu0 %v1284
  %1941 = vmatpush.bf16.msra.mxu0 %v1281
  %1942 = vmatpush.bf16.msra.mxu0 %v1278
  %1943 = vmatpush.bf16.msra.mxu0 %v1275
  %1944 = vmatpush.bf16.msra.mxu0 %v1272
  %1945 = vmatpush.bf16.msra.mxu0 %v1269
  %1946 = vmatmul.bf16.gmra.mxu0 %v56
  %v1947 = vpop.f32.mrf.mxu0
  %v1948 = vadd.f32 %v1935, %v1947
  %v1949 = vpop.f32.mrf.mxu0
  %1950 = vdwg.mxu0
  %1951 = vmatpush.bf16.msra.mxu0 %v1314
  %1952 = vmatpush.bf16.msra.mxu0 %v1311
  %1953 = vmatpush.bf16.msra.mxu0 %v1308
  %1954 = vmatpush.bf16.msra.mxu0 %v1305
  %1955 = vmatpush.bf16.msra.mxu0 %v1302
  %1956 = vmatpush.bf16.msra.mxu0 %v1299
  %1957 = vmatpush.bf16.msra.mxu0 %v1296
  %1958 = vmatpush.bf16.msra.mxu0 %v1293
  %1959 = vmatmul.bf16.gmra.mxu0 %v57
  %v1960 = vpop.f32.mrf.mxu0
  %v1961 = vadd.f32 %v1948, %v1960
  %v1962 = vpop.f32.mrf.mxu0
  %1963 = vdwg.mxu0
  %1964 = vmatpush.bf16.msra.mxu0 %v1338
  %1965 = vmatpush.bf16.msra.mxu0 %v1335
  %1966 = vmatpush.bf16.msra.mxu0 %v1332
  %1967 = vmatpush.bf16.msra.mxu0 %v1329
  %1968 = vmatpush.bf16.msra.mxu0 %v1326
  %1969 = vmatpush.bf16.msra.mxu0 %v1323
  %1970 = vmatpush.bf16.msra.mxu0 %v1320
  %1971 = vmatpush.bf16.msra.mxu0 %v1317
  %1972 = vmatmul.bf16.gmra.mxu0 %v58
  %v1973 = vpop.f32.mrf.mxu0
  %v1974 = vadd.f32 %v1961, %v1973
  %v1975 = vpop.f32.mrf.mxu0
  %1976 = vdwg.mxu0
  %1977 = vmatpush.bf16.msra.mxu0 %v1362
  %1978 = vmatpush.bf16.msra.mxu0 %v1359
  %1979 = vmatpush.bf16.msra.mxu0 %v1356
  %1980 = vmatpush.bf16.msra.mxu0 %v1353
  %1981 = vmatpush.bf16.msra.mxu0 %v1350
  %1982 = vmatpush.bf16.msra.mxu0 %v1347
  %1983 = vmatpush.bf16.msra.mxu0 %v1344
  %1984 = vmatpush.bf16.msra.mxu0 %v1341
  %1985 = vmatmul.bf16.gmra.mxu0 %v59
  %v1986 = vpop.f32.mrf.mxu0
  %v1987 = vadd.f32 %v1974, %v1986
  %v1988 = vpop.f32.mrf.mxu0
  %1989 = vdwg.mxu0
  %1990 = vmatpush.bf16.msra.mxu0 0
  %1991 = vmatpush.bf16.msra.mxu0 0
  %1992 = vmatpush.bf16.msra.mxu0 0
  %1993 = vmatpush.bf16.msra.mxu0 %v1377
  %1994 = vmatpush.bf16.msra.mxu0 %v1374
  %1995 = vmatpush.bf16.msra.mxu0 %v1371
  %1996 = vmatpush.bf16.msra.mxu0 %v1368
  %1997 = vmatpush.bf16.msra.mxu0 %v1365
  %1998 = vmatmul.bf16.gmra.mxu0 %v1611
  %v1999 = vpop.f32.mrf.mxu0
  %v2000 = vadd.f32 %v1987, %v1999
  %v2001 = vpop.f32.mrf.mxu0
  %2002 = vdwg.mxu0
  %v2003 = vmax.f32 %v1740, 0.0
  %v2004 = vmax.f32 %v1870, 0.0
  %v2005 = vmax.f32 %v2000, 0.0
  %v2006 = vpack.c.bf16 %v2003, %v2003
  %v2007 = vpack.c.bf16 %v2004, %v2004
  %v2008 = vpack.c.bf16 %v2005, %v2005
  %v2009 = vld [vmem:[%s3] sm:$0xff]
  %v2010 = vld [vmem:[%s3 + $0x8] sm:$0xff]
  %v2011 = vld [vmem:[%s3 + $0x10] sm:$0xff]
  %v2012 = vld [vmem:[%s3 + $0x18] sm:$0xff]
  %v2013 = vld [vmem:[%s3 + $0x20] sm:$0xff]
  %v2014 = vld [vmem:[%s3 + $0x28] sm:$0xff]
  %v2015 = vld [vmem:[%s3 + $0x30] sm:$0xff]
  %v2016 = vld [vmem:[%s3 + $0x38] sm:$0xff]
  %v2017 = vld [vmem:[%s3 + $0x40] sm:$0xff]
  %v2018 = vld [vmem:[%s3 + $0x48] sm:$0xff]
  %v2019 = vld [vmem:[%s3 + $0x50] sm:$0xff]
  %v2020 = vld [vmem:[%s3 + $0x58] sm:$0xff]
  %v2021 = vld [vmem:[%s3 + $0x60] sm:$0xff]
  %v2022 = vld [vmem:[%s3 + $0x68] sm:$0xff]
  %v2023 = vld [vmem:[%s3 + $0x70] sm:$0xff]
  %v2024 = vld [vmem:[%s3 + $0x78] sm:$0xff]
  %v2025 = vld [vmem:[%s3 + $0x80] sm:$0xff]
  %v2026 = vld [vmem:[%s3 + $0x88] sm:$0xff]
  %v2027 = vld [vmem:[%s3 + $0x90] sm:$0xff]
  %v2028 = vld [vmem:[%s3 + $0x98] sm:$0xff]
  %v2029 = vld [vmem:[%s3 + $0xa0] sm:$0xff]
  %v2030 = vld [vmem:[%s3 + $0xa8] sm:$0xff]
  %v2031 = vld [vmem:[%s3 + $0xb0] sm:$0xff]
  %v2032 = vld [vmem:[%s3 + $0xb8] sm:$0xff]
  %v2033 = vld [vmem:[%s3 + $0xc0] sm:$0xff]
  %v2034 = vld [vmem:[%s3 + $0xc8] sm:$0xff]
  %v2035 = vld [vmem:[%s3 + $0xd0] sm:$0xff]
  %v2036 = vld [vmem:[%s3 + $0xd8] sm:$0xff]
  %v2037 = vld [vmem:[%s3 + $0xe0] sm:$0xff]
  %v2038 = vld [vmem:[%s3 + $0xe8] sm:$0xff]
  %v2039 = vld [vmem:[%s3 + $0xf0] sm:$0xff]
  %v2040 = vld [vmem:[%s3 + $0xf8] sm:$0xff]
  %v2041 = vld [vmem:[%s3 + $0x100] sm:$0xff]
  %v2042 = vld [vmem:[%s3 + $0x108] sm:$0xff]
  %v2043 = vld [vmem:[%s3 + $0x110] sm:$0xff]
  %v2044 = vld [vmem:[%s3 + $0x118] sm:$0xff]
  %v2045 = vld [vmem:[%s3 + $0x120] sm:$0xff]
  %v2046 = vld [vmem:[%s3 + $0x128] sm:$0xff]
  %v2047 = vld [vmem:[%s3 + $0x130] sm:$0xff]
  %v2048 = vld [vmem:[%s3 + $0x138] sm:$0xff]
  %v2049 = vld [vmem:[%s3 + $0x140] sm:$0xff]
  %v2050 = vld [vmem:[%s3 + $0x148] sm:$0xff]
  %v2051 = vld [vmem:[%s3 + $0x150] sm:$0xff]
  %v2052 = vld [vmem:[%s3 + $0x158] sm:$0xff]
  %v2053 = vld [vmem:[%s3 + $0x160] sm:$0xff]
  %v2054 = vld [vmem:[%s3 + $0x168] sm:$0xff]
  %v2055 = vld [vmem:[%s3 + $0x170] sm:$0xff]
  %v2056 = vld [vmem:[%s3 + $0x178] sm:$0xff]
  %v2057 = vld [vmem:[%s3 + $0x180] sm:$0xff]
  %v2058 = vld [vmem:[%s3 + $0x188] sm:$0xff]
  %v2059 = vld [vmem:[%s3 + $0x190] sm:$0xff]
  %v2060 = vld [vmem:[%s3 + $0x198] sm:$0xff]
  %v2061 = vld [vmem:[%s3 + $0x1a0] sm:$0xff]
  %v2062 = vld [vmem:[%s3 + $0x1a8] sm:$0xff]
  %v2063 = vld [vmem:[%s3 + $0x1b0] sm:$0xff]
  %v2064 = vld [vmem:[%s3 + $0x1b8] sm:$0xff]
  %v2065 = vld [vmem:[%s3 + $0x1c0] sm:$0xff]
  %v2066 = vld [vmem:[%s3 + $0x1c8] sm:$0xff]
  %v2067 = vld [vmem:[%s3 + $0x1d0] sm:$0xff]
  %v2068 = vld [vmem:[%s3 + $0x1d8] sm:$0xff]
  %v2069 = vld [vmem:[%s3 + $0x1e0] sm:$0xff]
  %v2070 = vld [vmem:[%s3 + $0x1e8] sm:$0xff]
  %v2071 = vld [vmem:[%s3 + $0x1f0] sm:$0xff]
  %v2072 = vld [vmem:[%s3 + $0x1f8] sm:$0xff]
  %v2073 = vld [vmem:[%s3 + $0x200] sm:$0xff]
  %v2074 = vld [vmem:[%s3 + $0x208] sm:$0xff]
  %v2075 = vld [vmem:[%s3 + $0x210] sm:$0xff]
  %v2076 = vld [vmem:[%s3 + $0x218] sm:$0xff]
  %v2077 = vld [vmem:[%s3 + $0x220] sm:$0xff]
  %v2078 = vld [vmem:[%s3 + $0x228] sm:$0xff]
  %v2079 = vld [vmem:[%s3 + $0x230] sm:$0xff]
  %v2080 = vld [vmem:[%s3 + $0x238] sm:$0xff]
  %v2081 = vld [vmem:[%s3 + $0x240] sm:$0xff]
  %v2082 = vld [vmem:[%s3 + $0x248] sm:$0xff]
  %v2083 = vld [vmem:[%s3 + $0x250] sm:$0xff]
  %v2084 = vld [vmem:[%s3 + $0x258] sm:$0xff]
  %v2085 = vld [vmem:[%s3 + $0x260] sm:$0xff]
  %v2086 = vld [vmem:[%s3 + $0x268] sm:$0xff]
  %v2087 = vld [vmem:[%s3 + $0x270] sm:$0xff]
  %v2088 = vld [vmem:[%s3 + $0x278] sm:$0xff]
  %v2089 = vld [vmem:[%s3 + $0x280] sm:$0xff]
  %v2090 = vld [vmem:[%s3 + $0x288] sm:$0xff]
  %v2091 = vld [vmem:[%s3 + $0x290] sm:$0xff]
  %v2092 = vld [vmem:[%s3 + $0x298] sm:$0xff]
  %v2093 = vld [vmem:[%s3 + $0x2a0] sm:$0xff]
  %v2094 = vld [vmem:[%s3 + $0x2a8] sm:$0xff]
  %v2095 = vld [vmem:[%s3 + $0x2b0] sm:$0xff]
  %v2096 = vld [vmem:[%s3 + $0x2b8] sm:$0xff]
  %v2097 = vld [vmem:[%s3 + $0x2c0] sm:$0xff]
  %v2098 = vld [vmem:[%s3 + $0x2c8] sm:$0xff]
  %v2099 = vld [vmem:[%s3 + $0x2d0] sm:$0xff]
  %v2100 = vld [vmem:[%s3 + $0x2d8] sm:$0xff]
  %v2101 = vld [vmem:[%s3 + $0x2e0] sm:$0xff]
  %v2102 = vld [vmem:[%s3 + $0x2e8] sm:$0xff]
  %v2103 = vld [vmem:[%s3 + $0x2f0] sm:$0xff]
  %v2104 = vld [vmem:[%s3 + $0x2f8] sm:$0xff]
  %v2105 = vld [vmem:[%s3 + $0x300] sm:$0xff]
  %v2106 = vld [vmem:[%s3 + $0x308] sm:$0xff]
  %v2107 = vld [vmem:[%s3 + $0x310] sm:$0xff]
  %v2108 = vld [vmem:[%s3 + $0x318] sm:$0xff]
  %v2109 = vld [vmem:[%s3 + $0x320] sm:$0xff]
  %v2110 = vld [vmem:[%s3 + $0x328] sm:$0xff]
  %v2111 = vld [vmem:[%s3 + $0x330] sm:$0xff]
  %v2112 = vld [vmem:[%s3 + $0x338] sm:$0xff]
  %v2113 = vld [vmem:[%s3 + $0x340] sm:$0xff]
  %v2114 = vld [vmem:[%s3 + $0x348] sm:$0xff]
  %v2115 = vld [vmem:[%s3 + $0x350] sm:$0xff]
  %v2116 = vld [vmem:[%s3 + $0x358] sm:$0xff]
  %v2117 = vld [vmem:[%s3 + $0x360] sm:$0xff]
  %v2118 = vld [vmem:[%s3 + $0x368] sm:$0xff]
  %v2119 = vld [vmem:[%s3 + $0x370] sm:$0xff]
  %v2120 = vld [vmem:[%s3 + $0x378] sm:$0xff]
  %v2121 = vld [vmem:[%s3 + $0x380] sm:$0xff]
  %v2122 = vld [vmem:[%s3 + $0x388] sm:$0xff]
  %v2123 = vld [vmem:[%s3 + $0x390] sm:$0xff]
  %v2124 = vld [vmem:[%s3 + $0x398] sm:$0xff]
  %v2125 = vld [vmem:[%s3 + $0x3a0] sm:$0xff]
  %v2126 = vld [vmem:[%s3 + $0x3a8] sm:$0xff]
  %v2127 = vld [vmem:[%s3 + $0x3b0] sm:$0xff]
  %v2128 = vld [vmem:[%s3 + $0x3b8] sm:$0xff]
  %v2129 = vld [vmem:[%s3 + $0x3c0] sm:$0xff]
  %v2130 = vld [vmem:[%s3 + $0x3c8] sm:$0xff]
  %v2131 = vld [vmem:[%s3 + $0x3d0] sm:$0xff]
  %v2132 = vld [vmem:[%s3 + $0x3d8] sm:$0xff]
  %v2133 = vld [vmem:[%s3 + $0x3e0] sm:$0xff]
  %v2134 = vld [vmem:[%s3 + $0x3e8] sm:$0xff]
  %v2135 = vld [vmem:[%s3 + $0x3f0] sm:$0xff]
  %v2136 = vld [vmem:[%s3 + $0x3f8] sm:$0xff]
  %v2137 = vld [vmem:[%s3 + $0x400] sm:$0xff]
  %v2138 = vld [vmem:[%s3 + $0x408] sm:$0xff]
  %v2139 = vld [vmem:[%s3 + $0x410] sm:$0xff]
  %v2140 = vld [vmem:[%s3 + $0x418] sm:$0xff]
  %v2141 = vld [vmem:[%s3 + $0x420] sm:$0xff]
  %v2142 = vld [vmem:[%s3 + $0x428] sm:$0xff]
  %v2143 = vld [vmem:[%s3 + $0x430] sm:$0xff]
  %v2144 = vld [vmem:[%s3 + $0x438] sm:$0xff]
  %v2145 = vld [vmem:[%s3 + $0x440] sm:$0xff]
  %v2146 = vld [vmem:[%s3 + $0x448] sm:$0xff]
  %v2147 = vld [vmem:[%s3 + $0x450] sm:$0xff]
  %v2148 = vld [vmem:[%s3 + $0x458] sm:$0xff]
  %v2149 = vld [vmem:[%s3 + $0x460] sm:$0xff]
  %v2150 = vld [vmem:[%s3 + $0x468] sm:$0xff]
  %v2151 = vld [vmem:[%s3 + $0x470] sm:$0xff]
  %v2152 = vld [vmem:[%s3 + $0x478] sm:$0xff]
  %v2153 = vld [vmem:[%s3 + $0x480] sm:$0xff]
  %v2154 = vld [vmem:[%s3 + $0x488] sm:$0xff]
  %v2155 = vld [vmem:[%s3 + $0x490] sm:$0xff]
  %v2156 = vld [vmem:[%s3 + $0x498] sm:$0xff]
  %v2157 = vld [vmem:[%s3 + $0x4a0] sm:$0xff]
  %v2158 = vld [vmem:[%s3 + $0x4a8] sm:$0xff]
  %v2159 = vld [vmem:[%s3 + $0x4b0] sm:$0xff]
  %v2160 = vld [vmem:[%s3 + $0x4b8] sm:$0xff]
  %v2161 = vld [vmem:[%s3 + $0x4c0] sm:$0xff]
  %v2162 = vld [vmem:[%s3 + $0x4c8] sm:$0xff]
  %v2163 = vld [vmem:[%s3 + $0x4d0] sm:$0xff]
  %v2164 = vld [vmem:[%s3 + $0x4d8] sm:$0xff]
  %v2165 = vld [vmem:[%s3 + $0x4e0] sm:$0xff]
  %v2166 = vld [vmem:[%s3 + $0x4e8] sm:$0xff]
  %v2167 = vld [vmem:[%s3 + $0x4f0] sm:$0xff]
  %v2168 = vld [vmem:[%s3 + $0x4f8] sm:$0xff]
  %v2169 = vld [vmem:[%s3 + $0x500] sm:$0xff]
  %v2170 = vld [vmem:[%s3 + $0x508] sm:$0xff]
  %v2171 = vld [vmem:[%s3 + $0x510] sm:$0xff]
  %v2172 = vld [vmem:[%s3 + $0x518] sm:$0xff]
  %v2173 = vld [vmem:[%s3 + $0x520] sm:$0xff]
  %v2174 = vld [vmem:[%s3 + $0x528] sm:$0xff]
  %v2175 = vld [vmem:[%s3 + $0x530] sm:$0xff]
  %v2176 = vld [vmem:[%s3 + $0x538] sm:$0xff]
  %v2177 = vld [vmem:[%s3 + $0x540] sm:$0xff]
  %v2178 = vld [vmem:[%s3 + $0x548] sm:$0xff]
  %v2179 = vld [vmem:[%s3 + $0x550] sm:$0xff]
  %v2180 = vld [vmem:[%s3 + $0x558] sm:$0xff]
  %v2181 = vld [vmem:[%s3 + $0x560] sm:$0xff]
  %v2182 = vld [vmem:[%s3 + $0x568] sm:$0xff]
  %v2183 = vld [vmem:[%s3 + $0x570] sm:$0xff]
  %v2184 = vld [vmem:[%s3 + $0x578] sm:$0xff]
  %v2185 = vld [vmem:[%s3 + $0x580] sm:$0xff]
  %v2186 = vld [vmem:[%s3 + $0x588] sm:$0xff]
  %v2187 = vld [vmem:[%s3 + $0x590] sm:$0xff]
  %v2188 = vld [vmem:[%s3 + $0x598] sm:$0xff]
  %v2189 = vld [vmem:[%s3 + $0x5a0] sm:$0xff]
  %v2190 = vld [vmem:[%s3 + $0x5a8] sm:$0xff]
  %v2191 = vld [vmem:[%s3 + $0x5b0] sm:$0xff]
  %v2192 = vld [vmem:[%s3 + $0x5b8] sm:$0xff]
  %v2193 = vld [vmem:[%s3 + $0x5c0] sm:$0xff]
  %v2194 = vld [vmem:[%s3 + $0x5c8] sm:$0xff]
  %v2195 = vld [vmem:[%s3 + $0x5d0] sm:$0xff]
  %v2196 = vld [vmem:[%s3 + $0x5d8] sm:$0xff]
  %v2197 = vld [vmem:[%s3 + $0x5e0] sm:$0xff]
  %v2198 = vld [vmem:[%s3 + $0x5e8] sm:$0xff]
  %v2199 = vld [vmem:[%s3 + $0x5f0] sm:$0x33]
  %v2200 = vld [vmem:[%s3 + $0x5f8] sm:$0x33]
  %v2201 = vld [vmem:[%s3 + $0x600] sm:$0x33]
  %v2202 = vld [vmem:[%s3 + $0x608] sm:$0x33]
  %v2203 = vld [vmem:[%s3 + $0x610] sm:$0x33]
  %v2204 = vld [vmem:[%s4] sm:$0xff]
  %v2205 = vld [vmem:[%s4 + $0x8] sm:$0x3]
  %v2208 = vperm.slane %v2204, 0
  %v2209 = vperm.slane %v2204, 1
  %v2210 = vperm.slane %v2204, 2
  %v2211 = vperm.slane %v2204, 3
  %v2212 = vperm.slane %v2204, 4
  %v2213 = vperm.slane %v2204, 5
  %v2214 = vperm.slane %v2204, 6
  %v2215 = vperm.slane %v2204, 7
  %v2216 = vperm.slane %v2205, 0
  %v2217 = vperm.slane %v2205, 1
  %v2423 = vunpack.c.l.b16 %v2009
  %v2424 = vunpack.c.h.b16 %v2009
  %v2425 = vunpack.c.l.b16 %v2010
  %v2426 = vunpack.c.h.b16 %v2010
  %v2427 = vunpack.c.l.b16 %v2011
  %v2428 = vunpack.c.h.b16 %v2011
  %v2429 = vunpack.c.l.b16 %v2012
  %v2430 = vunpack.c.h.b16 %v2012
  %v2431 = vunpack.c.l.b16 %v2013
  %v2432 = vunpack.c.h.b16 %v2013
  %v2433 = vunpack.c.l.b16 %v2014
  %v2434 = vunpack.c.h.b16 %v2014
  %v2435 = vunpack.c.l.b16 %v2015
  %v2436 = vunpack.c.h.b16 %v2015
  %v2437 = vunpack.c.l.b16 %v2016
  %v2438 = vunpack.c.h.b16 %v2016
  %v2439 = vunpack.c.l.b16 %v2017
  %v2440 = vunpack.c.h.b16 %v2017
  %v2441 = vunpack.c.l.b16 %v2018
  %v2442 = vunpack.c.h.b16 %v2018
  %v2443 = vunpack.c.l.b16 %v2019
  %v2444 = vunpack.c.h.b16 %v2019
  %v2445 = vunpack.c.l.b16 %v2020
  %v2446 = vunpack.c.h.b16 %v2020
  %v2447 = vunpack.c.l.b16 %v2021
  %v2448 = vunpack.c.h.b16 %v2021
  %v2449 = vunpack.c.l.b16 %v2022
  %v2450 = vunpack.c.h.b16 %v2022
  %v2451 = vunpack.c.l.b16 %v2023
  %v2452 = vunpack.c.h.b16 %v2023
  %v2453 = vunpack.c.l.b16 %v2024
  %v2454 = vunpack.c.h.b16 %v2024
  %v2455 = vunpack.c.l.b16 %v2025
  %v2456 = vunpack.c.h.b16 %v2025
  %v2457 = vunpack.c.l.b16 %v2026
  %v2458 = vunpack.c.h.b16 %v2026
  %v2459 = vunpack.c.l.b16 %v2027
  %v2460 = vunpack.c.h.b16 %v2027
  %v2461 = vunpack.c.l.b16 %v2028
  %v2462 = vunpack.c.h.b16 %v2028
  %v2463 = vunpack.c.l.b16 %v2029
  %v2464 = vunpack.c.h.b16 %v2029
  %v2465 = vunpack.c.l.b16 %v2030
  %v2466 = vunpack.c.h.b16 %v2030
  %v2467 = vunpack.c.l.b16 %v2031
  %v2468 = vunpack.c.h.b16 %v2031
  %v2469 = vunpack.c.l.b16 %v2032
  %v2470 = vunpack.c.h.b16 %v2032
  %v2471 = vunpack.c.l.b16 %v2033
  %v2472 = vunpack.c.h.b16 %v2033
  %v2473 = vunpack.c.l.b16 %v2034
  %v2474 = vunpack.c.h.b16 %v2034
  %v2475 = vunpack.c.l.b16 %v2035
  %v2476 = vunpack.c.h.b16 %v2035
  %v2477 = vunpack.c.l.b16 %v2036
  %v2478 = vunpack.c.h.b16 %v2036
  %v2479 = vunpack.c.l.b16 %v2037
  %v2480 = vunpack.c.h.b16 %v2037
  %v2481 = vunpack.c.l.b16 %v2038
  %v2482 = vunpack.c.h.b16 %v2038
  %v2483 = vunpack.c.l.b16 %v2039
  %v2484 = vunpack.c.h.b16 %v2039
  %v2485 = vunpack.c.l.b16 %v2040
  %v2486 = vunpack.c.h.b16 %v2040
  %v2487 = vunpack.c.l.b16 %v2041
  %v2488 = vunpack.c.h.b16 %v2041
  %v2489 = vunpack.c.l.b16 %v2042
  %v2490 = vunpack.c.h.b16 %v2042
  %v2491 = vunpack.c.l.b16 %v2043
  %v2492 = vunpack.c.h.b16 %v2043
  %v2493 = vunpack.c.l.b16 %v2044
  %v2494 = vunpack.c.h.b16 %v2044
  %v2495 = vunpack.c.l.b16 %v2045
  %v2496 = vunpack.c.h.b16 %v2045
  %v2497 = vunpack.c.l.b16 %v2046
  %v2498 = vunpack.c.h.b16 %v2046
  %v2499 = vunpack.c.l.b16 %v2047
  %v2500 = vunpack.c.h.b16 %v2047
  %v2501 = vunpack.c.l.b16 %v2048
  %v2502 = vunpack.c.h.b16 %v2048
  %v2503 = vunpack.c.l.b16 %v2049
  %v2504 = vunpack.c.h.b16 %v2049
  %v2505 = vunpack.c.l.b16 %v2050
  %v2506 = vunpack.c.h.b16 %v2050
  %v2507 = vunpack.c.l.b16 %v2051
  %v2508 = vunpack.c.h.b16 %v2051
  %v2509 = vunpack.c.l.b16 %v2052
  %v2510 = vunpack.c.h.b16 %v2052
  %v2511 = vunpack.c.l.b16 %v2053
  %v2512 = vunpack.c.h.b16 %v2053
  %v2513 = vunpack.c.l.b16 %v2054
  %v2514 = vunpack.c.h.b16 %v2054
  %v2515 = vunpack.c.l.b16 %v2055
  %v2516 = vunpack.c.h.b16 %v2055
  %v2517 = vunpack.c.l.b16 %v2056
  %v2518 = vunpack.c.h.b16 %v2056
  %v2519 = vunpack.c.l.b16 %v2057
  %v2520 = vunpack.c.h.b16 %v2057
  %v2521 = vunpack.c.l.b16 %v2058
  %v2522 = vunpack.c.h.b16 %v2058
  %v2523 = vunpack.c.l.b16 %v2059
  %v2524 = vunpack.c.h.b16 %v2059
  %v2525 = vunpack.c.l.b16 %v2060
  %v2526 = vunpack.c.h.b16 %v2060
  %v2527 = vunpack.c.l.b16 %v2061
  %v2528 = vunpack.c.h.b16 %v2061
  %v2529 = vunpack.c.l.b16 %v2062
  %v2530 = vunpack.c.h.b16 %v2062
  %v2531 = vunpack.c.l.b16 %v2063
  %v2532 = vunpack.c.h.b16 %v2063
  %v2533 = vunpack.c.l.b16 %v2064
  %v2534 = vunpack.c.h.b16 %v2064
  %v2535 = vunpack.c.l.b16 %v2065
  %v2536 = vunpack.c.h.b16 %v2065
  %v2537 = vunpack.c.l.b16 %v2066
  %v2538 = vunpack.c.h.b16 %v2066
  %v2539 = vunpack.c.l.b16 %v2067
  %v2540 = vunpack.c.h.b16 %v2067
  %v2541 = vunpack.c.l.b16 %v2068
  %v2542 = vunpack.c.h.b16 %v2068
  %v2543 = vunpack.c.l.b16 %v2069
  %v2544 = vunpack.c.h.b16 %v2069
  %v2545 = vunpack.c.l.b16 %v2070
  %v2546 = vunpack.c.h.b16 %v2070
  %v2547 = vunpack.c.l.b16 %v2071
  %v2548 = vunpack.c.h.b16 %v2071
  %v2549 = vunpack.c.l.b16 %v2072
  %v2550 = vunpack.c.h.b16 %v2072
  %v2551 = vunpack.c.l.b16 %v2073
  %v2552 = vunpack.c.h.b16 %v2073
  %v2553 = vunpack.c.l.b16 %v2074
  %v2554 = vunpack.c.h.b16 %v2074
  %v2555 = vunpack.c.l.b16 %v2075
  %v2556 = vunpack.c.h.b16 %v2075
  %v2557 = vunpack.c.l.b16 %v2076
  %v2558 = vunpack.c.h.b16 %v2076
  %v2559 = vunpack.c.l.b16 %v2077
  %v2560 = vunpack.c.h.b16 %v2077
  %v2561 = vunpack.c.l.b16 %v2078
  %v2562 = vunpack.c.h.b16 %v2078
  %v2563 = vunpack.c.l.b16 %v2079
  %v2564 = vunpack.c.h.b16 %v2079
  %v2565 = vunpack.c.l.b16 %v2080
  %v2566 = vunpack.c.h.b16 %v2080
  %v2567 = vunpack.c.l.b16 %v2081
  %v2568 = vunpack.c.h.b16 %v2081
  %v2569 = vunpack.c.l.b16 %v2082
  %v2570 = vunpack.c.h.b16 %v2082
  %v2571 = vunpack.c.l.b16 %v2083
  %v2572 = vunpack.c.h.b16 %v2083
  %v2573 = vunpack.c.l.b16 %v2084
  %v2574 = vunpack.c.h.b16 %v2084
  %v2575 = vunpack.c.l.b16 %v2085
  %v2576 = vunpack.c.h.b16 %v2085
  %v2577 = vunpack.c.l.b16 %v2086
  %v2578 = vunpack.c.h.b16 %v2086
  %v2579 = vunpack.c.l.b16 %v2087
  %v2580 = vunpack.c.h.b16 %v2087
  %v2581 = vunpack.c.l.b16 %v2088
  %v2582 = vunpack.c.h.b16 %v2088
  %v2583 = vunpack.c.l.b16 %v2089
  %v2584 = vunpack.c.h.b16 %v2089
  %v2585 = vunpack.c.l.b16 %v2090
  %v2586 = vunpack.c.h.b16 %v2090
  %v2587 = vunpack.c.l.b16 %v2091
  %v2588 = vunpack.c.h.b16 %v2091
  %v2589 = vunpack.c.l.b16 %v2092
  %v2590 = vunpack.c.h.b16 %v2092
  %v2591 = vunpack.c.l.b16 %v2093
  %v2592 = vunpack.c.h.b16 %v2093
  %v2593 = vunpack.c.l.b16 %v2094
  %v2594 = vunpack.c.h.b16 %v2094
  %v2595 = vunpack.c.l.b16 %v2095
  %v2596 = vunpack.c.h.b16 %v2095
  %v2597 = vunpack.c.l.b16 %v2096
  %v2598 = vunpack.c.h.b16 %v2096
  %v2599 = vunpack.c.l.b16 %v2097
  %v2600 = vunpack.c.h.b16 %v2097
  %v2601 = vunpack.c.l.b16 %v2098
  %v2602 = vunpack.c.h.b16 %v2098
  %v2603 = vunpack.c.l.b16 %v2099
  %v2604 = vunpack.c.h.b16 %v2099
  %v2605 = vunpack.c.l.b16 %v2100
  %v2606 = vunpack.c.h.b16 %v2100
  %v2607 = vunpack.c.l.b16 %v2101
  %v2608 = vunpack.c.h.b16 %v2101
  %v2609 = vunpack.c.l.b16 %v2102
  %v2610 = vunpack.c.h.b16 %v2102
  %v2611 = vunpack.c.l.b16 %v2103
  %v2612 = vunpack.c.h.b16 %v2103
  %v2613 = vunpack.c.l.b16 %v2104
  %v2614 = vunpack.c.h.b16 %v2104
  %v2615 = vunpack.c.l.b16 %v2105
  %v2616 = vunpack.c.h.b16 %v2105
  %v2617 = vunpack.c.l.b16 %v2106
  %v2618 = vunpack.c.h.b16 %v2106
  %v2619 = vunpack.c.l.b16 %v2107
  %v2620 = vunpack.c.h.b16 %v2107
  %v2621 = vunpack.c.l.b16 %v2108
  %v2622 = vunpack.c.h.b16 %v2108
  %v2623 = vunpack.c.l.b16 %v2109
  %v2624 = vunpack.c.h.b16 %v2109
  %v2625 = vunpack.c.l.b16 %v2110
  %v2626 = vunpack.c.h.b16 %v2110
  %v2627 = vunpack.c.l.b16 %v2111
  %v2628 = vunpack.c.h.b16 %v2111
  %v2629 = vunpack.c.l.b16 %v2112
  %v2630 = vunpack.c.h.b16 %v2112
  %v2631 = vunpack.c.l.b16 %v2113
  %v2632 = vunpack.c.h.b16 %v2113
  %v2633 = vunpack.c.l.b16 %v2114
  %v2634 = vunpack.c.h.b16 %v2114
  %v2635 = vunpack.c.l.b16 %v2115
  %v2636 = vunpack.c.h.b16 %v2115
  %v2637 = vunpack.c.l.b16 %v2116
  %v2638 = vunpack.c.h.b16 %v2116
  %v2639 = vunpack.c.l.b16 %v2117
  %v2640 = vunpack.c.h.b16 %v2117
  %v2641 = vunpack.c.l.b16 %v2118
  %v2642 = vunpack.c.h.b16 %v2118
  %v2643 = vunpack.c.l.b16 %v2119
  %v2644 = vunpack.c.h.b16 %v2119
  %v2645 = vunpack.c.l.b16 %v2120
  %v2646 = vunpack.c.h.b16 %v2120
  %v2647 = vunpack.c.l.b16 %v2121
  %v2648 = vunpack.c.h.b16 %v2121
  %v2649 = vunpack.c.l.b16 %v2122
  %v2650 = vunpack.c.h.b16 %v2122
  %v2651 = vunpack.c.l.b16 %v2123
  %v2652 = vunpack.c.h.b16 %v2123
  %v2653 = vunpack.c.l.b16 %v2124
  %v2654 = vunpack.c.h.b16 %v2124
  %v2655 = vunpack.c.l.b16 %v2125
  %v2656 = vunpack.c.h.b16 %v2125
  %v2657 = vunpack.c.l.b16 %v2126
  %v2658 = vunpack.c.h.b16 %v2126
  %v2659 = vunpack.c.l.b16 %v2127
  %v2660 = vunpack.c.h.b16 %v2127
  %v2661 = vunpack.c.l.b16 %v2128
  %v2662 = vunpack.c.h.b16 %v2128
  %v2663 = vunpack.c.l.b16 %v2129
  %v2664 = vunpack.c.h.b16 %v2129
  %v2665 = vunpack.c.l.b16 %v2130
  %v2666 = vunpack.c.h.b16 %v2130
  %v2667 = vunpack.c.l.b16 %v2131
  %v2668 = vunpack.c.h.b16 %v2131
  %v2669 = vunpack.c.l.b16 %v2132
  %v2670 = vunpack.c.h.b16 %v2132
  %v2671 = vunpack.c.l.b16 %v2133
  %v2672 = vunpack.c.h.b16 %v2133
  %v2673 = vunpack.c.l.b16 %v2134
  %v2674 = vunpack.c.h.b16 %v2134
  %v2675 = vunpack.c.l.b16 %v2135
  %v2676 = vunpack.c.h.b16 %v2135
  %v2677 = vunpack.c.l.b16 %v2136
  %v2678 = vunpack.c.h.b16 %v2136
  %v2679 = vunpack.c.l.b16 %v2137
  %v2680 = vunpack.c.h.b16 %v2137
  %v2681 = vunpack.c.l.b16 %v2138
  %v2682 = vunpack.c.h.b16 %v2138
  %v2683 = vunpack.c.l.b16 %v2139
  %v2684 = vunpack.c.h.b16 %v2139
  %v2685 = vunpack.c.l.b16 %v2140
  %v2686 = vunpack.c.h.b16 %v2140
  %v2687 = vunpack.c.l.b16 %v2141
  %v2688 = vunpack.c.h.b16 %v2141
  %v2689 = vunpack.c.l.b16 %v2142
  %v2690 = vunpack.c.h.b16 %v2142
  %v2691 = vunpack.c.l.b16 %v2143
  %v2692 = vunpack.c.h.b16 %v2143
  %v2693 = vunpack.c.l.b16 %v2144
  %v2694 = vunpack.c.h.b16 %v2144
  %v2695 = vunpack.c.l.b16 %v2145
  %v2696 = vunpack.c.h.b16 %v2145
  %v2697 = vunpack.c.l.b16 %v2146
  %v2698 = vunpack.c.h.b16 %v2146
  %v2699 = vunpack.c.l.b16 %v2147
  %v2700 = vunpack.c.h.b16 %v2147
  %v2701 = vunpack.c.l.b16 %v2148
  %v2702 = vunpack.c.h.b16 %v2148
  %v2703 = vunpack.c.l.b16 %v2149
  %v2704 = vunpack.c.h.b16 %v2149
  %v2705 = vunpack.c.l.b16 %v2150
  %v2706 = vunpack.c.h.b16 %v2150
  %v2707 = vunpack.c.l.b16 %v2151
  %v2708 = vunpack.c.h.b16 %v2151
  %v2709 = vunpack.c.l.b16 %v2152
  %v2710 = vunpack.c.h.b16 %v2152
  %v2711 = vunpack.c.l.b16 %v2153
  %v2712 = vunpack.c.h.b16 %v2153
  %v2713 = vunpack.c.l.b16 %v2154
  %v2714 = vunpack.c.h.b16 %v2154
  %v2715 = vunpack.c.l.b16 %v2155
  %v2716 = vunpack.c.h.b16 %v2155
  %v2717 = vunpack.c.l.b16 %v2156
  %v2718 = vunpack.c.h.b16 %v2156
  %v2719 = vunpack.c.l.b16 %v2157
  %v2720 = vunpack.c.h.b16 %v2157
  %v2721 = vunpack.c.l.b16 %v2158
  %v2722 = vunpack.c.h.b16 %v2158
  %v2723 = vunpack.c.l.b16 %v2159
  %v2724 = vunpack.c.h.b16 %v2159
  %v2725 = vunpack.c.l.b16 %v2160
  %v2726 = vunpack.c.h.b16 %v2160
  %v2727 = vunpack.c.l.b16 %v2161
  %v2728 = vunpack.c.h.b16 %v2161
  %v2729 = vunpack.c.l.b16 %v2162
  %v2730 = vunpack.c.h.b16 %v2162
  %v2731 = vunpack.c.l.b16 %v2163
  %v2732 = vunpack.c.h.b16 %v2163
  %v2733 = vunpack.c.l.b16 %v2164
  %v2734 = vunpack.c.h.b16 %v2164
  %v2735 = vunpack.c.l.b16 %v2165
  %v2736 = vunpack.c.h.b16 %v2165
  %v2737 = vunpack.c.l.b16 %v2166
  %v2738 = vunpack.c.h.b16 %v2166
  %v2739 = vunpack.c.l.b16 %v2167
  %v2740 = vunpack.c.h.b16 %v2167
  %v2741 = vunpack.c.l.b16 %v2168
  %v2742 = vunpack.c.h.b16 %v2168
  %v2743 = vunpack.c.l.b16 %v2169
  %v2744 = vunpack.c.h.b16 %v2169
  %v2745 = vunpack.c.l.b16 %v2170
  %v2746 = vunpack.c.h.b16 %v2170
  %v2747 = vunpack.c.l.b16 %v2171
  %v2748 = vunpack.c.h.b16 %v2171
  %v2749 = vunpack.c.l.b16 %v2172
  %v2750 = vunpack.c.h.b16 %v2172
  %v2751 = vunpack.c.l.b16 %v2173
  %v2752 = vunpack.c.h.b16 %v2173
  %v2753 = vunpack.c.l.b16 %v2174
  %v2754 = vunpack.c.h.b16 %v2174
  %v2755 = vunpack.c.l.b16 %v2175
  %v2756 = vunpack.c.h.b16 %v2175
  %v2757 = vunpack.c.l.b16 %v2176
  %v2758 = vunpack.c.h.b16 %v2176
  %v2759 = vunpack.c.l.b16 %v2177
  %v2760 = vunpack.c.h.b16 %v2177
  %v2761 = vunpack.c.l.b16 %v2178
  %v2762 = vunpack.c.h.b16 %v2178
  %v2763 = vunpack.c.l.b16 %v2179
  %v2764 = vunpack.c.h.b16 %v2179
  %v2765 = vunpack.c.l.b16 %v2180
  %v2766 = vunpack.c.h.b16 %v2180
  %v2767 = vunpack.c.l.b16 %v2181
  %v2768 = vunpack.c.h.b16 %v2181
  %v2769 = vunpack.c.l.b16 %v2182
  %v2770 = vunpack.c.h.b16 %v2182
  %v2771 = vunpack.c.l.b16 %v2183
  %v2772 = vunpack.c.h.b16 %v2183
  %v2773 = vunpack.c.l.b16 %v2184
  %v2774 = vunpack.c.h.b16 %v2184
  %v2775 = vunpack.c.l.b16 %v2185
  %v2776 = vunpack.c.h.b16 %v2185
  %v2777 = vunpack.c.l.b16 %v2186
  %v2778 = vunpack.c.h.b16 %v2186
  %v2779 = vunpack.c.l.b16 %v2187
  %v2780 = vunpack.c.h.b16 %v2187
  %v2781 = vunpack.c.l.b16 %v2188
  %v2782 = vunpack.c.h.b16 %v2188
  %v2783 = vunpack.c.l.b16 %v2189
  %v2784 = vunpack.c.h.b16 %v2189
  %v2785 = vunpack.c.l.b16 %v2190
  %v2786 = vunpack.c.h.b16 %v2190
  %v2787 = vunpack.c.l.b16 %v2191
  %v2788 = vunpack.c.h.b16 %v2191
  %v2789 = vunpack.c.l.b16 %v2192
  %v2790 = vunpack.c.h.b16 %v2192
  %v2791 = vunpack.c.l.b16 %v2193
  %v2792 = vunpack.c.h.b16 %v2193
  %v2793 = vunpack.c.l.b16 %v2194
  %v2794 = vunpack.c.h.b16 %v2194
  %v2795 = vunpack.c.l.b16 %v2195
  %v2796 = vunpack.c.h.b16 %v2195
  %v2797 = vunpack.c.l.b16 %v2196
  %v2798 = vunpack.c.h.b16 %v2196
  %v2799 = vunpack.c.l.b16 %v2197
  %v2800 = vunpack.c.h.b16 %v2197
  %v2801 = vunpack.c.l.b16 %v2198
  %v2802 = vunpack.c.h.b16 %v2198
  %v2803 = vunpack.c.l.b16 %v2199
  %v2804 = vunpack.c.h.b16 %v2199
  %v2805 = vunpack.c.l.b16 %v2200
  %v2806 = vunpack.c.h.b16 %v2200
  %v2807 = vunpack.c.l.b16 %v2201
  %v2808 = vunpack.c.h.b16 %v2201
  %v2809 = vunpack.c.l.b16 %v2202
  %v2810 = vunpack.c.h.b16 %v2202
  %v2811 = vunpack.c.l.b16 %v2203
  %v2812 = vunpack.c.h.b16 %v2203
  %v2813 = vpack.c.b16 %v2433, %v2423
  %v2814 = vpack.c.b16 %v2434, %v2424
  %v2815 = vpack.c.b16 %v2435, %v2425
  %v2816 = vpack.c.b16 %v2436, %v2426
  %v2817 = vpack.c.b16 %v2437, %v2427
  %v2818 = vpack.c.b16 %v2438, %v2428
  %v2819 = vpack.c.b16 %v2439, %v2429
  %v2820 = vpack.c.b16 %v2440, %v2430
  %v2821 = vpack.c.b16 %v2441, %v2431
  %v2822 = vpack.c.b16 %v2442, %v2432
  %v2823 = vpack.c.b16 %v2453, %v2443
  %v2824 = vpack.c.b16 %v2454, %v2444
  %v2825 = vpack.c.b16 %v2455, %v2445
  %v2826 = vpack.c.b16 %v2456, %v2446
  %v2827 = vpack.c.b16 %v2457, %v2447
  %v2828 = vpack.c.b16 %v2458, %v2448
  %v2829 = vpack.c.b16 %v2459, %v2449
  %v2830 = vpack.c.b16 %v2460, %v2450
  %v2831 = vpack.c.b16 %v2461, %v2451
  %v2832 = vpack.c.b16 %v2462, %v2452
  %v2833 = vpack.c.b16 %v2473, %v2463
  %v2834 = vpack.c.b16 %v2474, %v2464
  %v2835 = vpack.c.b16 %v2475, %v2465
  %v2836 = vpack.c.b16 %v2476, %v2466
  %v2837 = vpack.c.b16 %v2477, %v2467
  %v2838 = vpack.c.b16 %v2478, %v2468
  %v2839 = vpack.c.b16 %v2479, %v2469
  %v2840 = vpack.c.b16 %v2480, %v2470
  %v2841 = vpack.c.b16 %v2481, %v2471
  %v2842 = vpack.c.b16 %v2482, %v2472
  %v2843 = vpack.c.b16 %v2493, %v2483
  %v2844 = vpack.c.b16 %v2494, %v2484
  %v2845 = vpack.c.b16 %v2495, %v2485
  %v2846 = vpack.c.b16 %v2496, %v2486
  %v2847 = vpack.c.b16 %v2497, %v2487
  %v2848 = vpack.c.b16 %v2498, %v2488
  %v2849 = vpack.c.b16 %v2499, %v2489
  %v2850 = vpack.c.b16 %v2500, %v2490
  %v2851 = vpack.c.b16 %v2501, %v2491
  %v2852 = vpack.c.b16 %v2502, %v2492
  %v2853 = vpack.c.b16 %v2513, %v2503
  %v2854 = vpack.c.b16 %v2514, %v2504
  %v2855 = vpack.c.b16 %v2515, %v2505
  %v2856 = vpack.c.b16 %v2516, %v2506
  %v2857 = vpack.c.b16 %v2517, %v2507
  %v2858 = vpack.c.b16 %v2518, %v2508
  %v2859 = vpack.c.b16 %v2519, %v2509
  %v2860 = vpack.c.b16 %v2520, %v2510
  %v2861 = vpack.c.b16 %v2521, %v2511
  %v2862 = vpack.c.b16 %v2522, %v2512
  %v2863 = vpack.c.b16 %v2533, %v2523
  %v2864 = vpack.c.b16 %v2534, %v2524
  %v2865 = vpack.c.b16 %v2535, %v2525
  %v2866 = vpack.c.b16 %v2536, %v2526
  %v2867 = vpack.c.b16 %v2537, %v2527
  %v2868 = vpack.c.b16 %v2538, %v2528
  %v2869 = vpack.c.b16 %v2539, %v2529
  %v2870 = vpack.c.b16 %v2540, %v2530
  %v2871 = vpack.c.b16 %v2541, %v2531
  %v2872 = vpack.c.b16 %v2542, %v2532
  %v2873 = vpack.c.b16 %v2553, %v2543
  %v2874 = vpack.c.b16 %v2554, %v2544
  %v2875 = vpack.c.b16 %v2555, %v2545
  %v2876 = vpack.c.b16 %v2556, %v2546
  %v2877 = vpack.c.b16 %v2557, %v2547
  %v2878 = vpack.c.b16 %v2558, %v2548
  %v2879 = vpack.c.b16 %v2559, %v2549
  %v2880 = vpack.c.b16 %v2560, %v2550
  %v2881 = vpack.c.b16 %v2561, %v2551
  %v2882 = vpack.c.b16 %v2562, %v2552
  %v2883 = vpack.c.b16 %v2573, %v2563
  %v2884 = vpack.c.b16 %v2574, %v2564
  %v2885 = vpack.c.b16 %v2575, %v2565
  %v2886 = vpack.c.b16 %v2576, %v2566
  %v2887 = vpack.c.b16 %v2577, %v2567
  %v2888 = vpack.c.b16 %v2578, %v2568
  %v2889 = vpack.c.b16 %v2579, %v2569
  %v2890 = vpack.c.b16 %v2580, %v2570
  %v2891 = vpack.c.b16 %v2581, %v2571
  %v2892 = vpack.c.b16 %v2582, %v2572
  %v2893 = vpack.c.b16 %v2593, %v2583
  %v2894 = vpack.c.b16 %v2594, %v2584
  %v2895 = vpack.c.b16 %v2595, %v2585
  %v2896 = vpack.c.b16 %v2596, %v2586
  %v2897 = vpack.c.b16 %v2597, %v2587
  %v2898 = vpack.c.b16 %v2598, %v2588
  %v2899 = vpack.c.b16 %v2599, %v2589
  %v2900 = vpack.c.b16 %v2600, %v2590
  %v2901 = vpack.c.b16 %v2601, %v2591
  %v2902 = vpack.c.b16 %v2602, %v2592
  %v2903 = vpack.c.b16 %v2613, %v2603
  %v2904 = vpack.c.b16 %v2614, %v2604
  %v2905 = vpack.c.b16 %v2615, %v2605
  %v2906 = vpack.c.b16 %v2616, %v2606
  %v2907 = vpack.c.b16 %v2617, %v2607
  %v2908 = vpack.c.b16 %v2618, %v2608
  %v2909 = vpack.c.b16 %v2619, %v2609
  %v2910 = vpack.c.b16 %v2620, %v2610
  %v2911 = vpack.c.b16 %v2621, %v2611
  %v2912 = vpack.c.b16 %v2622, %v2612
  %v2913 = vpack.c.b16 %v2633, %v2623
  %v2914 = vpack.c.b16 %v2634, %v2624
  %v2915 = vpack.c.b16 %v2635, %v2625
  %v2916 = vpack.c.b16 %v2636, %v2626
  %v2917 = vpack.c.b16 %v2637, %v2627
  %v2918 = vpack.c.b16 %v2638, %v2628
  %v2919 = vpack.c.b16 %v2639, %v2629
  %v2920 = vpack.c.b16 %v2640, %v2630
  %v2921 = vpack.c.b16 %v2641, %v2631
  %v2922 = vpack.c.b16 %v2642, %v2632
  %v2923 = vpack.c.b16 %v2653, %v2643
  %v2924 = vpack.c.b16 %v2654, %v2644
  %v2925 = vpack.c.b16 %v2655, %v2645
  %v2926 = vpack.c.b16 %v2656, %v2646
  %v2927 = vpack.c.b16 %v2657, %v2647
  %v2928 = vpack.c.b16 %v2658, %v2648
  %v2929 = vpack.c.b16 %v2659, %v2649
  %v2930 = vpack.c.b16 %v2660, %v2650
  %v2931 = vpack.c.b16 %v2661, %v2651
  %v2932 = vpack.c.b16 %v2662, %v2652
  %v2933 = vpack.c.b16 %v2673, %v2663
  %v2934 = vpack.c.b16 %v2674, %v2664
  %v2935 = vpack.c.b16 %v2675, %v2665
  %v2936 = vpack.c.b16 %v2676, %v2666
  %v2937 = vpack.c.b16 %v2677, %v2667
  %v2938 = vpack.c.b16 %v2678, %v2668
  %v2939 = vpack.c.b16 %v2679, %v2669
  %v2940 = vpack.c.b16 %v2680, %v2670
  %v2941 = vpack.c.b16 %v2681, %v2671
  %v2942 = vpack.c.b16 %v2682, %v2672
  %v2943 = vpack.c.b16 %v2693, %v2683
  %v2944 = vpack.c.b16 %v2694, %v2684
  %v2945 = vpack.c.b16 %v2695, %v2685
  %v2946 = vpack.c.b16 %v2696, %v2686
  %v2947 = vpack.c.b16 %v2697, %v2687
  %v2948 = vpack.c.b16 %v2698, %v2688
  %v2949 = vpack.c.b16 %v2699, %v2689
  %v2950 = vpack.c.b16 %v2700, %v2690
  %v2951 = vpack.c.b16 %v2701, %v2691
  %v2952 = vpack.c.b16 %v2702, %v2692
  %v2953 = vpack.c.b16 %v2713, %v2703
  %v2954 = vpack.c.b16 %v2714, %v2704
  %v2955 = vpack.c.b16 %v2715, %v2705
  %v2956 = vpack.c.b16 %v2716, %v2706
  %v2957 = vpack.c.b16 %v2717, %v2707
  %v2958 = vpack.c.b16 %v2718, %v2708
  %v2959 = vpack.c.b16 %v2719, %v2709
  %v2960 = vpack.c.b16 %v2720, %v2710
  %v2961 = vpack.c.b16 %v2721, %v2711
  %v2962 = vpack.c.b16 %v2722, %v2712
  %v2963 = vpack.c.b16 %v2733, %v2723
  %v2964 = vpack.c.b16 %v2734, %v2724
  %v2965 = vpack.c.b16 %v2735, %v2725
  %v2966 = vpack.c.b16 %v2736, %v2726
  %v2967 = vpack.c.b16 %v2737, %v2727
  %v2968 = vpack.c.b16 %v2738, %v2728
  %v2969 = vpack.c.b16 %v2739, %v2729
  %v2970 = vpack.c.b16 %v2740, %v2730
  %v2971 = vpack.c.b16 %v2741, %v2731
  %v2972 = vpack.c.b16 %v2742, %v2732
  %v2973 = vpack.c.b16 %v2753, %v2743
  %v2974 = vpack.c.b16 %v2754, %v2744
  %v2975 = vpack.c.b16 %v2755, %v2745
  %v2976 = vpack.c.b16 %v2756, %v2746
  %v2977 = vpack.c.b16 %v2757, %v2747
  %v2978 = vpack.c.b16 %v2758, %v2748
  %v2979 = vpack.c.b16 %v2759, %v2749
  %v2980 = vpack.c.b16 %v2760, %v2750
  %v2981 = vpack.c.b16 %v2761, %v2751
  %v2982 = vpack.c.b16 %v2762, %v2752
  %v2983 = vpack.c.b16 %v2773, %v2763
  %v2984 = vpack.c.b16 %v2774, %v2764
  %v2985 = vpack.c.b16 %v2775, %v2765
  %v2986 = vpack.c.b16 %v2776, %v2766
  %v2987 = vpack.c.b16 %v2777, %v2767
  %v2988 = vpack.c.b16 %v2778, %v2768
  %v2989 = vpack.c.b16 %v2779, %v2769
  %v2990 = vpack.c.b16 %v2780, %v2770
  %v2991 = vpack.c.b16 %v2781, %v2771
  %v2992 = vpack.c.b16 %v2782, %v2772
  %v2993 = vpack.c.b16 %v2793, %v2783
  %v2994 = vpack.c.b16 %v2794, %v2784
  %v2995 = vpack.c.b16 %v2795, %v2785
  %v2996 = vpack.c.b16 %v2796, %v2786
  %v2997 = vpack.c.b16 %v2797, %v2787
  %v2998 = vpack.c.b16 %v2798, %v2788
  %v2999 = vpack.c.b16 %v2799, %v2789
  %v3000 = vpack.c.b16 %v2800, %v2790
  %v3001 = vpack.c.b16 %v2801, %v2791
  %v3002 = vpack.c.b16 %v2802, %v2792
  %v3003 = vpack.c.b16 %v2803, %v2803
  %v3004 = vpack.c.b16 %v2804, %v2804
  %v3005 = vpack.c.b16 %v2805, %v2805
  %v3006 = vpack.c.b16 %v2806, %v2806
  %v3007 = vpack.c.b16 %v2807, %v2807
  %v3008 = vpack.c.b16 %v2808, %v2808
  %v3009 = vpack.c.b16 %v2809, %v2809
  %v3010 = vpack.c.b16 %v2810, %v2810
  %v3011 = vpack.c.b16 %v2811, %v2811
  %v3012 = vpack.c.b16 %v2812, %v2812
  %vm3203 = vcmask 424960
  %v3205 = vsel %vm3203, %v2008, 0
  %vm3207 = vcmask 1041408
  %v3209 = vsel %vm3207, %v3003, 0
  %v3212 = vsel %vm3207, %v3004, 0
  %v3215 = vsel %vm3207, %v3005, 0
  %v3218 = vsel %vm3207, %v3006, 0
  %v3221 = vsel %vm3207, %v3007, 0
  %v3224 = vsel %vm3207, %v3008, 0
  %v3227 = vsel %vm3207, %v3009, 0
  %v3230 = vsel %vm3207, %v3010, 0
  %v3233 = vsel %vm3207, %v3011, 0
  %v3236 = vsel %vm3207, %v3012, 0
  %3238 = vmatpush.bf16.msra.mxu0 %v2883
  %3239 = vmatpush.bf16.msra.mxu0 %v2873
  %3240 = vmatpush.bf16.msra.mxu0 %v2863
  %3241 = vmatpush.bf16.msra.mxu0 %v2853
  %3242 = vmatpush.bf16.msra.mxu0 %v2843
  %3243 = vmatpush.bf16.msra.mxu0 %v2833
  %3244 = vmatpush.bf16.msra.mxu0 %v2823
  %3245 = vmatpush.bf16.msra.mxu0 %v2813
  %3246 = vmatmul.bf16.gmra.mxu0 %v2006
  %v3247 = vpop.f32.mrf.mxu0
  %v3248 = vadd.f32 %v2208, %v3247
  %v3249 = vpop.f32.mrf.mxu0
  %3250 = vdwg.mxu0
  %3251 = vmatpush.bf16.msra.mxu0 %v2963
  %3252 = vmatpush.bf16.msra.mxu0 %v2953
  %3253 = vmatpush.bf16.msra.mxu0 %v2943
  %3254 = vmatpush.bf16.msra.mxu0 %v2933
  %3255 = vmatpush.bf16.msra.mxu0 %v2923
  %3256 = vmatpush.bf16.msra.mxu0 %v2913
  %3257 = vmatpush.bf16.msra.mxu0 %v2903
  %3258 = vmatpush.bf16.msra.mxu0 %v2893
  %3259 = vmatmul.bf16.gmra.mxu0 %v2007
  %v3260 = vpop.f32.mrf.mxu0
  %v3261 = vadd.f32 %v3248, %v3260
  %v3262 = vpop.f32.mrf.mxu0
  %3263 = vdwg.mxu0
  %3264 = vmatpush.bf16.msra.mxu0 0
  %3265 = vmatpush.bf16.msra.mxu0 0
  %3266 = vmatpush.bf16.msra.mxu0 0
  %3267 = vmatpush.bf16.msra.mxu0 0
  %3268 = vmatpush.bf16.msra.mxu0 %v3209
  %3269 = vmatpush.bf16.msra.mxu0 %v2993
  %3270 = vmatpush.bf16.msra.mxu0 %v2983
  %3271 = vmatpush.bf16.msra.mxu0 %v2973
  %3272 = vmatmul.bf16.gmra.mxu0 %v3205
  %v3273 = vpop.f32.mrf.mxu0
  %v3274 = vadd.f32 %v3261, %v3273
  %v3275 = vpop.f32.mrf.mxu0
  %3276 = vdwg.mxu0
  %3277 = vmatpush.bf16.msra.mxu0 %v2884
  %3278 = vmatpush.bf16.msra.mxu0 %v2874
  %3279 = vmatpush.bf16.msra.mxu0 %v2864
  %3280 = vmatpush.bf16.msra.mxu0 %v2854
  %3281 = vmatpush.bf16.msra.mxu0 %v2844
  %3282 = vmatpush.bf16.msra.mxu0 %v2834
  %3283 = vmatpush.bf16.msra.mxu0 %v2824
  %3284 = vmatpush.bf16.msra.mxu0 %v2814
  %3285 = vmatmul.bf16.gmra.mxu0 %v2006
  %v3286 = vpop.f32.mrf.mxu0
  %v3287 = vadd.f32 %v2209, %v3286
  %v3288 = vpop.f32.mrf.mxu0
  %3289 = vdwg.mxu0
  %3290 = vmatpush.bf16.msra.mxu0 %v2964
  %3291 = vmatpush.bf16.msra.mxu0 %v2954
  %3292 = vmatpush.bf16.msra.mxu0 %v2944
  %3293 = vmatpush.bf16.msra.mxu0 %v2934
  %3294 = vmatpush.bf16.msra.mxu0 %v2924
  %3295 = vmatpush.bf16.msra.mxu0 %v2914
  %3296 = vmatpush.bf16.msra.mxu0 %v2904
  %3297 = vmatpush.bf16.msra.mxu0 %v2894
  %3298 = vmatmul.bf16.gmra.mxu0 %v2007
  %v3299 = vpop.f32.mrf.mxu0
  %v3300 = vadd.f32 %v3287, %v3299
  %v3301 = vpop.f32.mrf.mxu0
  %3302 = vdwg.mxu0
  %3303 = vmatpush.bf16.msra.mxu0 0
  %3304 = vmatpush.bf16.msra.mxu0 0
  %3305 = vmatpush.bf16.msra.mxu0 0
  %3306 = vmatpush.bf16.msra.mxu0 0
  %3307 = vmatpush.bf16.msra.mxu0 %v3212
  %3308 = vmatpush.bf16.msra.mxu0 %v2994
  %3309 = vmatpush.bf16.msra.mxu0 %v2984
  %3310 = vmatpush.bf16.msra.mxu0 %v2974
  %3311 = vmatmul.bf16.gmra.mxu0 %v3205
  %v3312 = vpop.f32.mrf.mxu0
  %v3313 = vadd.f32 %v3300, %v3312
  %v3314 = vpop.f32.mrf.mxu0
  %3315 = vdwg.mxu0
  %3316 = vmatpush.bf16.msra.mxu0 %v2885
  %3317 = vmatpush.bf16.msra.mxu0 %v2875
  %3318 = vmatpush.bf16.msra.mxu0 %v2865
  %3319 = vmatpush.bf16.msra.mxu0 %v2855
  %3320 = vmatpush.bf16.msra.mxu0 %v2845
  %3321 = vmatpush.bf16.msra.mxu0 %v2835
  %3322 = vmatpush.bf16.msra.mxu0 %v2825
  %3323 = vmatpush.bf16.msra.mxu0 %v2815
  %3324 = vmatmul.bf16.gmra.mxu0 %v2006
  %v3325 = vpop.f32.mrf.mxu0
  %v3326 = vadd.f32 %v2210, %v3325
  %v3327 = vpop.f32.mrf.mxu0
  %3328 = vdwg.mxu0
  %3329 = vmatpush.bf16.msra.mxu0 %v2965
  %3330 = vmatpush.bf16.msra.mxu0 %v2955
  %3331 = vmatpush.bf16.msra.mxu0 %v2945
  %3332 = vmatpush.bf16.msra.mxu0 %v2935
  %3333 = vmatpush.bf16.msra.mxu0 %v2925
  %3334 = vmatpush.bf16.msra.mxu0 %v2915
  %3335 = vmatpush.bf16.msra.mxu0 %v2905
  %3336 = vmatpush.bf16.msra.mxu0 %v2895
  %3337 = vmatmul.bf16.gmra.mxu0 %v2007
  %v3338 = vpop.f32.mrf.mxu0
  %v3339 = vadd.f32 %v3326, %v3338
  %v3340 = vpop.f32.mrf.mxu0
  %3341 = vdwg.mxu0
  %3342 = vmatpush.bf16.msra.mxu0 0
  %3343 = vmatpush.bf16.msra.mxu0 0
  %3344 = vmatpush.bf16.msra.mxu0 0
  %3345 = vmatpush.bf16.msra.mxu0 0
  %3346 = vmatpush.bf16.msra.mxu0 %v3215
  %3347 = vmatpush.bf16.msra.mxu0 %v2995
  %3348 = vmatpush.bf16.msra.mxu0 %v2985
  %3349 = vmatpush.bf16.msra.mxu0 %v2975
  %3350 = vmatmul.bf16.gmra.mxu0 %v3205
  %v3351 = vpop.f32.mrf.mxu0
  %v3352 = vadd.f32 %v3339, %v3351
  %v3353 = vpop.f32.mrf.mxu0
  %3354 = vdwg.mxu0
  %3355 = vmatpush.bf16.msra.mxu0 %v2886
  %3356 = vmatpush.bf16.msra.mxu0 %v2876
  %3357 = vmatpush.bf16.msra.mxu0 %v2866
  %3358 = vmatpush.bf16.msra.mxu0 %v2856
  %3359 = vmatpush.bf16.msra.mxu0 %v2846
  %3360 = vmatpush.bf16.msra.mxu0 %v2836
  %3361 = vmatpush.bf16.msra.mxu0 %v2826
  %3362 = vmatpush.bf16.msra.mxu0 %v2816
  %3363 = vmatmul.bf16.gmra.mxu0 %v2006
  %v3364 = vpop.f32.mrf.mxu0
  %v3365 = vadd.f32 %v2211, %v3364
  %v3366 = vpop.f32.mrf.mxu0
  %3367 = vdwg.mxu0
  %3368 = vmatpush.bf16.msra.mxu0 %v2966
  %3369 = vmatpush.bf16.msra.mxu0 %v2956
  %3370 = vmatpush.bf16.msra.mxu0 %v2946
  %3371 = vmatpush.bf16.msra.mxu0 %v2936
  %3372 = vmatpush.bf16.msra.mxu0 %v2926
  %3373 = vmatpush.bf16.msra.mxu0 %v2916
  %3374 = vmatpush.bf16.msra.mxu0 %v2906
  %3375 = vmatpush.bf16.msra.mxu0 %v2896
  %3376 = vmatmul.bf16.gmra.mxu0 %v2007
  %v3377 = vpop.f32.mrf.mxu0
  %v3378 = vadd.f32 %v3365, %v3377
  %v3379 = vpop.f32.mrf.mxu0
  %3380 = vdwg.mxu0
  %3381 = vmatpush.bf16.msra.mxu0 0
  %3382 = vmatpush.bf16.msra.mxu0 0
  %3383 = vmatpush.bf16.msra.mxu0 0
  %3384 = vmatpush.bf16.msra.mxu0 0
  %3385 = vmatpush.bf16.msra.mxu0 %v3218
  %3386 = vmatpush.bf16.msra.mxu0 %v2996
  %3387 = vmatpush.bf16.msra.mxu0 %v2986
  %3388 = vmatpush.bf16.msra.mxu0 %v2976
  %3389 = vmatmul.bf16.gmra.mxu0 %v3205
  %v3390 = vpop.f32.mrf.mxu0
  %v3391 = vadd.f32 %v3378, %v3390
  %v3392 = vpop.f32.mrf.mxu0
  %3393 = vdwg.mxu0
  %3394 = vmatpush.bf16.msra.mxu0 %v2887
  %3395 = vmatpush.bf16.msra.mxu0 %v2877
  %3396 = vmatpush.bf16.msra.mxu0 %v2867
  %3397 = vmatpush.bf16.msra.mxu0 %v2857
  %3398 = vmatpush.bf16.msra.mxu0 %v2847
  %3399 = vmatpush.bf16.msra.mxu0 %v2837
  %3400 = vmatpush.bf16.msra.mxu0 %v2827
  %3401 = vmatpush.bf16.msra.mxu0 %v2817
  %3402 = vmatmul.bf16.gmra.mxu0 %v2006
  %v3403 = vpop.f32.mrf.mxu0
  %v3404 = vadd.f32 %v2212, %v3403
  %v3405 = vpop.f32.mrf.mxu0
  %3406 = vdwg.mxu0
  %3407 = vmatpush.bf16.msra.mxu0 %v2967
  %3408 = vmatpush.bf16.msra.mxu0 %v2957
  %3409 = vmatpush.bf16.msra.mxu0 %v2947
  %3410 = vmatpush.bf16.msra.mxu0 %v2937
  %3411 = vmatpush.bf16.msra.mxu0 %v2927
  %3412 = vmatpush.bf16.msra.mxu0 %v2917
  %3413 = vmatpush.bf16.msra.mxu0 %v2907
  %3414 = vmatpush.bf16.msra.mxu0 %v2897
  %3415 = vmatmul.bf16.gmra.mxu0 %v2007
  %v3416 = vpop.f32.mrf.mxu0
  %v3417 = vadd.f32 %v3404, %v3416
  %v3418 = vpop.f32.mrf.mxu0
  %3419 = vdwg.mxu0
  %3420 = vmatpush.bf16.msra.mxu0 0
  %3421 = vmatpush.bf16.msra.mxu0 0
  %3422 = vmatpush.bf16.msra.mxu0 0
  %3423 = vmatpush.bf16.msra.mxu0 0
  %3424 = vmatpush.bf16.msra.mxu0 %v3221
  %3425 = vmatpush.bf16.msra.mxu0 %v2997
  %3426 = vmatpush.bf16.msra.mxu0 %v2987
  %3427 = vmatpush.bf16.msra.mxu0 %v2977
  %3428 = vmatmul.bf16.gmra.mxu0 %v3205
  %v3429 = vpop.f32.mrf.mxu0
  %v3430 = vadd.f32 %v3417, %v3429
  %v3431 = vpop.f32.mrf.mxu0
  %3432 = vdwg.mxu0
  %3433 = vmatpush.bf16.msra.mxu0 %v2888
  %3434 = vmatpush.bf16.msra.mxu0 %v2878
  %3435 = vmatpush.bf16.msra.mxu0 %v2868
  %3436 = vmatpush.bf16.msra.mxu0 %v2858
  %3437 = vmatpush.bf16.msra.mxu0 %v2848
  %3438 = vmatpush.bf16.msra.mxu0 %v2838
  %3439 = vmatpush.bf16.msra.mxu0 %v2828
  %3440 = vmatpush.bf16.msra.mxu0 %v2818
  %3441 = vmatmul.bf16.gmra.mxu0 %v2006
  %v3442 = vpop.f32.mrf.mxu0
  %v3443 = vadd.f32 %v2213, %v3442
  %v3444 = vpop.f32.mrf.mxu0
  %3445 = vdwg.mxu0
  %3446 = vmatpush.bf16.msra.mxu0 %v2968
  %3447 = vmatpush.bf16.msra.mxu0 %v2958
  %3448 = vmatpush.bf16.msra.mxu0 %v2948
  %3449 = vmatpush.bf16.msra.mxu0 %v2938
  %3450 = vmatpush.bf16.msra.mxu0 %v2928
  %3451 = vmatpush.bf16.msra.mxu0 %v2918
  %3452 = vmatpush.bf16.msra.mxu0 %v2908
  %3453 = vmatpush.bf16.msra.mxu0 %v2898
  %3454 = vmatmul.bf16.gmra.mxu0 %v2007
  %v3455 = vpop.f32.mrf.mxu0
  %v3456 = vadd.f32 %v3443, %v3455
  %v3457 = vpop.f32.mrf.mxu0
  %3458 = vdwg.mxu0
  %3459 = vmatpush.bf16.msra.mxu0 0
  %3460 = vmatpush.bf16.msra.mxu0 0
  %3461 = vmatpush.bf16.msra.mxu0 0
  %3462 = vmatpush.bf16.msra.mxu0 0
  %3463 = vmatpush.bf16.msra.mxu0 %v3224
  %3464 = vmatpush.bf16.msra.mxu0 %v2998
  %3465 = vmatpush.bf16.msra.mxu0 %v2988
  %3466 = vmatpush.bf16.msra.mxu0 %v2978
  %3467 = vmatmul.bf16.gmra.mxu0 %v3205
  %v3468 = vpop.f32.mrf.mxu0
  %v3469 = vadd.f32 %v3456, %v3468
  %v3470 = vpop.f32.mrf.mxu0
  %3471 = vdwg.mxu0
  %3472 = vmatpush.bf16.msra.mxu0 %v2889
  %3473 = vmatpush.bf16.msra.mxu0 %v2879
  %3474 = vmatpush.bf16.msra.mxu0 %v2869
  %3475 = vmatpush.bf16.msra.mxu0 %v2859
  %3476 = vmatpush.bf16.msra.mxu0 %v2849
  %3477 = vmatpush.bf16.msra.mxu0 %v2839
  %3478 = vmatpush.bf16.msra.mxu0 %v2829
  %3479 = vmatpush.bf16.msra.mxu0 %v2819
  %3480 = vmatmul.bf16.gmra.mxu0 %v2006
  %v3481 = vpop.f32.mrf.mxu0
  %v3482 = vadd.f32 %v2214, %v3481
  %v3483 = vpop.f32.mrf.mxu0
  %3484 = vdwg.mxu0
  %3485 = vmatpush.bf16.msra.mxu0 %v2969
  %3486 = vmatpush.bf16.msra.mxu0 %v2959
  %3487 = vmatpush.bf16.msra.mxu0 %v2949
  %3488 = vmatpush.bf16.msra.mxu0 %v2939
  %3489 = vmatpush.bf16.msra.mxu0 %v2929
  %3490 = vmatpush.bf16.msra.mxu0 %v2919
  %3491 = vmatpush.bf16.msra.mxu0 %v2909
  %3492 = vmatpush.bf16.msra.mxu0 %v2899
  %3493 = vmatmul.bf16.gmra.mxu0 %v2007
  %v3494 = vpop.f32.mrf.mxu0
  %v3495 = vadd.f32 %v3482, %v3494
  %v3496 = vpop.f32.mrf.mxu0
  %3497 = vdwg.mxu0
  %3498 = vmatpush.bf16.msra.mxu0 0
  %3499 = vmatpush.bf16.msra.mxu0 0
  %3500 = vmatpush.bf16.msra.mxu0 0
  %3501 = vmatpush.bf16.msra.mxu0 0
  %3502 = vmatpush.bf16.msra.mxu0 %v3227
  %3503 = vmatpush.bf16.msra.mxu0 %v2999
  %3504 = vmatpush.bf16.msra.mxu0 %v2989
  %3505 = vmatpush.bf16.msra.mxu0 %v2979
  %3506 = vmatmul.bf16.gmra.mxu0 %v3205
  %v3507 = vpop.f32.mrf.mxu0
  %v3508 = vadd.f32 %v3495, %v3507
  %v3509 = vpop.f32.mrf.mxu0
  %3510 = vdwg.mxu0
  %3511 = vmatpush.bf16.msra.mxu0 %v2890
  %3512 = vmatpush.bf16.msra.mxu0 %v2880
  %3513 = vmatpush.bf16.msra.mxu0 %v2870
  %3514 = vmatpush.bf16.msra.mxu0 %v2860
  %3515 = vmatpush.bf16.msra.mxu0 %v2850
  %3516 = vmatpush.bf16.msra.mxu0 %v2840
  %3517 = vmatpush.bf16.msra.mxu0 %v2830
  %3518 = vmatpush.bf16.msra.mxu0 %v2820
  %3519 = vmatmul.bf16.gmra.mxu0 %v2006
  %v3520 = vpop.f32.mrf.mxu0
  %v3521 = vadd.f32 %v2215, %v3520
  %v3522 = vpop.f32.mrf.mxu0
  %3523 = vdwg.mxu0
  %3524 = vmatpush.bf16.msra.mxu0 %v2970
  %3525 = vmatpush.bf16.msra.mxu0 %v2960
  %3526 = vmatpush.bf16.msra.mxu0 %v2950
  %3527 = vmatpush.bf16.msra.mxu0 %v2940
  %3528 = vmatpush.bf16.msra.mxu0 %v2930
  %3529 = vmatpush.bf16.msra.mxu0 %v2920
  %3530 = vmatpush.bf16.msra.mxu0 %v2910
  %3531 = vmatpush.bf16.msra.mxu0 %v2900
  %3532 = vmatmul.bf16.gmra.mxu0 %v2007
  %v3533 = vpop.f32.mrf.mxu0
  %v3534 = vadd.f32 %v3521, %v3533
  %v3535 = vpop.f32.mrf.mxu0
  %3536 = vdwg.mxu0
  %3537 = vmatpush.bf16.msra.mxu0 0
  %3538 = vmatpush.bf16.msra.mxu0 0
  %3539 = vmatpush.bf16.msra.mxu0 0
  %3540 = vmatpush.bf16.msra.mxu0 0
  %3541 = vmatpush.bf16.msra.mxu0 %v3230
  %3542 = vmatpush.bf16.msra.mxu0 %v3000
  %3543 = vmatpush.bf16.msra.mxu0 %v2990
  %3544 = vmatpush.bf16.msra.mxu0 %v2980
  %3545 = vmatmul.bf16.gmra.mxu0 %v3205
  %v3546 = vpop.f32.mrf.mxu0
  %v3547 = vadd.f32 %v3534, %v3546
  %v3548 = vpop.f32.mrf.mxu0
  %3549 = vdwg.mxu0
  %3550 = vmatpush.bf16.msra.mxu0 %v2891
  %3551 = vmatpush.bf16.msra.mxu0 %v2881
  %3552 = vmatpush.bf16.msra.mxu0 %v2871
  %3553 = vmatpush.bf16.msra.mxu0 %v2861
  %3554 = vmatpush.bf16.msra.mxu0 %v2851
  %3555 = vmatpush.bf16.msra.mxu0 %v2841
  %3556 = vmatpush.bf16.msra.mxu0 %v2831
  %3557 = vmatpush.bf16.msra.mxu0 %v2821
  %3558 = vmatmul.bf16.gmra.mxu0 %v2006
  %v3559 = vpop.f32.mrf.mxu0
  %v3560 = vadd.f32 %v2216, %v3559
  %v3561 = vpop.f32.mrf.mxu0
  %3562 = vdwg.mxu0
  %3563 = vmatpush.bf16.msra.mxu0 %v2971
  %3564 = vmatpush.bf16.msra.mxu0 %v2961
  %3565 = vmatpush.bf16.msra.mxu0 %v2951
  %3566 = vmatpush.bf16.msra.mxu0 %v2941
  %3567 = vmatpush.bf16.msra.mxu0 %v2931
  %3568 = vmatpush.bf16.msra.mxu0 %v2921
  %3569 = vmatpush.bf16.msra.mxu0 %v2911
  %3570 = vmatpush.bf16.msra.mxu0 %v2901
  %3571 = vmatmul.bf16.gmra.mxu0 %v2007
  %v3572 = vpop.f32.mrf.mxu0
  %v3573 = vadd.f32 %v3560, %v3572
  %v3574 = vpop.f32.mrf.mxu0
  %3575 = vdwg.mxu0
  %3576 = vmatpush.bf16.msra.mxu0 0
  %3577 = vmatpush.bf16.msra.mxu0 0
  %3578 = vmatpush.bf16.msra.mxu0 0
  %3579 = vmatpush.bf16.msra.mxu0 0
  %3580 = vmatpush.bf16.msra.mxu0 %v3233
  %3581 = vmatpush.bf16.msra.mxu0 %v3001
  %3582 = vmatpush.bf16.msra.mxu0 %v2991
  %3583 = vmatpush.bf16.msra.mxu0 %v2981
  %3584 = vmatmul.bf16.gmra.mxu0 %v3205
  %v3585 = vpop.f32.mrf.mxu0
  %v3586 = vadd.f32 %v3573, %v3585
  %v3587 = vpop.f32.mrf.mxu0
  %3588 = vdwg.mxu0
  %3589 = vmatpush.bf16.msra.mxu0 %v2892
  %3590 = vmatpush.bf16.msra.mxu0 %v2882
  %3591 = vmatpush.bf16.msra.mxu0 %v2872
  %3592 = vmatpush.bf16.msra.mxu0 %v2862
  %3593 = vmatpush.bf16.msra.mxu0 %v2852
  %3594 = vmatpush.bf16.msra.mxu0 %v2842
  %3595 = vmatpush.bf16.msra.mxu0 %v2832
  %3596 = vmatpush.bf16.msra.mxu0 %v2822
  %3597 = vmatmul.bf16.gmra.mxu0 %v2006
  %v3598 = vpop.f32.mrf.mxu0
  %v3599 = vadd.f32 %v2217, %v3598
  %v3600 = vpop.f32.mrf.mxu0
  %3601 = vdwg.mxu0
  %3602 = vmatpush.bf16.msra.mxu0 %v2972
  %3603 = vmatpush.bf16.msra.mxu0 %v2962
  %3604 = vmatpush.bf16.msra.mxu0 %v2952
  %3605 = vmatpush.bf16.msra.mxu0 %v2942
  %3606 = vmatpush.bf16.msra.mxu0 %v2932
  %3607 = vmatpush.bf16.msra.mxu0 %v2922
  %3608 = vmatpush.bf16.msra.mxu0 %v2912
  %3609 = vmatpush.bf16.msra.mxu0 %v2902
  %3610 = vmatmul.bf16.gmra.mxu0 %v2007
  %v3611 = vpop.f32.mrf.mxu0
  %v3612 = vadd.f32 %v3599, %v3611
  %v3613 = vpop.f32.mrf.mxu0
  %3614 = vdwg.mxu0
  %3615 = vmatpush.bf16.msra.mxu0 0
  %3616 = vmatpush.bf16.msra.mxu0 0
  %3617 = vmatpush.bf16.msra.mxu0 0
  %3618 = vmatpush.bf16.msra.mxu0 0
  %3619 = vmatpush.bf16.msra.mxu0 %v3236
  %3620 = vmatpush.bf16.msra.mxu0 %v3002
  %3621 = vmatpush.bf16.msra.mxu0 %v2992
  %3622 = vmatpush.bf16.msra.mxu0 %v2982
  %3623 = vmatmul.bf16.gmra.mxu0 %v3205
  %v3624 = vpop.f32.mrf.mxu0
  %v3625 = vadd.f32 %v3612, %v3624
  %v3626 = vpop.f32.mrf.mxu0
  %3627 = vdwg.mxu0
  %v3628 = vxor.u32 %v3274, 2147483648
  %v3629 = vxor.u32 %v3313, 2147483648
  %v3630 = vxor.u32 %v3352, 2147483648
  %v3631 = vxor.u32 %v3391, 2147483648
  %v3632 = vxor.u32 %v3430, 2147483648
  %v3633 = vxor.u32 %v3469, 2147483648
  %v3634 = vxor.u32 %v3508, 2147483648
  %v3635 = vxor.u32 %v3547, 2147483648
  %v3636 = vxor.u32 %v3586, 2147483648
  %v3637 = vxor.u32 %v3625, 2147483648
  %v3638 = vmul.f32 %v3628, 1.442695
  %v3639 = vpow.pop %v3638
  %v3640 = vmul.f32 %v3629, 1.442695
  %v3641 = vpow.pop %v3640
  %v3642 = vmul.f32 %v3630, 1.442695
  %v3643 = vpow.pop %v3642
  %v3644 = vmul.f32 %v3631, 1.442695
  %v3645 = vpow.pop %v3644
  %v3646 = vmul.f32 %v3632, 1.442695
  %v3647 = vpow.pop %v3646
  %v3648 = vmul.f32 %v3633, 1.442695
  %v3649 = vpow.pop %v3648
  %v3650 = vmul.f32 %v3634, 1.442695
  %v3651 = vpow.pop %v3650
  %v3652 = vmul.f32 %v3635, 1.442695
  %v3653 = vpow.pop %v3652
  %v3654 = vmul.f32 %v3636, 1.442695
  %v3655 = vpow.pop %v3654
  %v3656 = vmul.f32 %v3637, 1.442695
  %v3657 = vpow.pop %v3656
  %v3658 = vadd.f32 %v3639, 1.0
  %v3659 = vadd.f32 %v3641, 1.0
  %v3660 = vadd.f32 %v3643, 1.0
  %v3661 = vadd.f32 %v3645, 1.0
  %v3662 = vadd.f32 %v3647, 1.0
  %v3663 = vadd.f32 %v3649, 1.0
  %v3664 = vadd.f32 %v3651, 1.0
  %v3665 = vadd.f32 %v3653, 1.0
  %v3666 = vadd.f32 %v3655, 1.0
  %v3667 = vadd.f32 %v3657, 1.0
  %v3668 = vrcp.pop %v3658
  %v3669 = vmul.f32 %v3658, %v3668
  %v3670 = vsub.f32 1.0, %v3669
  %v3671 = vmul.f32 %v3668, %v3670
  %v3672 = vadd.f32 %v3668, %v3671
  %vm3673 = vweird.f32 %v3658
  %vm3674 = vweird.f32 %v3668
  %vm3675 = vmor %vm3673, %vm3674
  %v3676 = vsel %vm3675, %v3668, %v3672
  %v3677 = vand.u32 2147483647, %v3658
  %vm3678 = vcmp.eq.f32.partialorder %v3677, 8.507059e+37
  %v3679 = vand.u32 %v3658, 2147483648
  %v3680 = vor.u32 1.1754944e-38, %v3679
  %v3681 = vsel %vm3678, %v3680, %v3676
  %v3682 = vmul.f32 1.0, %v3681
  %v3683 = vrcp.pop %v3659
  %v3684 = vmul.f32 %v3659, %v3683
  %v3685 = vsub.f32 1.0, %v3684
  %v3686 = vmul.f32 %v3683, %v3685
  %v3687 = vadd.f32 %v3683, %v3686
  %vm3688 = vweird.f32 %v3659
  %vm3689 = vweird.f32 %v3683
  %vm3690 = vmor %vm3688, %vm3689
  %v3691 = vsel %vm3690, %v3683, %v3687
  %v3692 = vand.u32 2147483647, %v3659
  %vm3693 = vcmp.eq.f32.partialorder %v3692, 8.507059e+37
  %v3694 = vand.u32 %v3659, 2147483648
  %v3695 = vor.u32 1.1754944e-38, %v3694
  %v3696 = vsel %vm3693, %v3695, %v3691
  %v3697 = vmul.f32 1.0, %v3696
  %v3698 = vrcp.pop %v3660
  %v3699 = vmul.f32 %v3660, %v3698
  %v3700 = vsub.f32 1.0, %v3699
  %v3701 = vmul.f32 %v3698, %v3700
  %v3702 = vadd.f32 %v3698, %v3701
  %vm3703 = vweird.f32 %v3660
  %vm3704 = vweird.f32 %v3698
  %vm3705 = vmor %vm3703, %vm3704
  %v3706 = vsel %vm3705, %v3698, %v3702
  %v3707 = vand.u32 2147483647, %v3660
  %vm3708 = vcmp.eq.f32.partialorder %v3707, 8.507059e+37
  %v3709 = vand.u32 %v3660, 2147483648
  %v3710 = vor.u32 1.1754944e-38, %v3709
  %v3711 = vsel %vm3708, %v3710, %v3706
  %v3712 = vmul.f32 1.0, %v3711
  %v3713 = vrcp.pop %v3661
  %v3714 = vmul.f32 %v3661, %v3713
  %v3715 = vsub.f32 1.0, %v3714
  %v3716 = vmul.f32 %v3713, %v3715
  %v3717 = vadd.f32 %v3713, %v3716
  %vm3718 = vweird.f32 %v3661
  %vm3719 = vweird.f32 %v3713
  %vm3720 = vmor %vm3718, %vm3719
  %v3721 = vsel %vm3720, %v3713, %v3717
  %v3722 = vand.u32 2147483647, %v3661
  %vm3723 = vcmp.eq.f32.partialorder %v3722, 8.507059e+37
  %v3724 = vand.u32 %v3661, 2147483648
  %v3725 = vor.u32 1.1754944e-38, %v3724
  %v3726 = vsel %vm3723, %v3725, %v3721
  %v3727 = vmul.f32 1.0, %v3726
  %v3728 = vrcp.pop %v3662
  %v3729 = vmul.f32 %v3662, %v3728
  %v3730 = vsub.f32 1.0, %v3729
  %v3731 = vmul.f32 %v3728, %v3730
  %v3732 = vadd.f32 %v3728, %v3731
  %vm3733 = vweird.f32 %v3662
  %vm3734 = vweird.f32 %v3728
  %vm3735 = vmor %vm3733, %vm3734
  %v3736 = vsel %vm3735, %v3728, %v3732
  %v3737 = vand.u32 2147483647, %v3662
  %vm3738 = vcmp.eq.f32.partialorder %v3737, 8.507059e+37
  %v3739 = vand.u32 %v3662, 2147483648
  %v3740 = vor.u32 1.1754944e-38, %v3739
  %v3741 = vsel %vm3738, %v3740, %v3736
  %v3742 = vmul.f32 1.0, %v3741
  %v3743 = vrcp.pop %v3663
  %v3744 = vmul.f32 %v3663, %v3743
  %v3745 = vsub.f32 1.0, %v3744
  %v3746 = vmul.f32 %v3743, %v3745
  %v3747 = vadd.f32 %v3743, %v3746
  %vm3748 = vweird.f32 %v3663
  %vm3749 = vweird.f32 %v3743
  %vm3750 = vmor %vm3748, %vm3749
  %v3751 = vsel %vm3750, %v3743, %v3747
  %v3752 = vand.u32 2147483647, %v3663
  %vm3753 = vcmp.eq.f32.partialorder %v3752, 8.507059e+37
  %v3754 = vand.u32 %v3663, 2147483648
  %v3755 = vor.u32 1.1754944e-38, %v3754
  %v3756 = vsel %vm3753, %v3755, %v3751
  %v3757 = vmul.f32 1.0, %v3756
  %v3758 = vrcp.pop %v3664
  %v3759 = vmul.f32 %v3664, %v3758
  %v3760 = vsub.f32 1.0, %v3759
  %v3761 = vmul.f32 %v3758, %v3760
  %v3762 = vadd.f32 %v3758, %v3761
  %vm3763 = vweird.f32 %v3664
  %vm3764 = vweird.f32 %v3758
  %vm3765 = vmor %vm3763, %vm3764
  %v3766 = vsel %vm3765, %v3758, %v3762
  %v3767 = vand.u32 2147483647, %v3664
  %vm3768 = vcmp.eq.f32.partialorder %v3767, 8.507059e+37
  %v3769 = vand.u32 %v3664, 2147483648
  %v3770 = vor.u32 1.1754944e-38, %v3769
  %v3771 = vsel %vm3768, %v3770, %v3766
  %v3772 = vmul.f32 1.0, %v3771
  %v3773 = vrcp.pop %v3665
  %v3774 = vmul.f32 %v3665, %v3773
  %v3775 = vsub.f32 1.0, %v3774
  %v3776 = vmul.f32 %v3773, %v3775
  %v3777 = vadd.f32 %v3773, %v3776
  %vm3778 = vweird.f32 %v3665
  %vm3779 = vweird.f32 %v3773
  %vm3780 = vmor %vm3778, %vm3779
  %v3781 = vsel %vm3780, %v3773, %v3777
  %v3782 = vand.u32 2147483647, %v3665
  %vm3783 = vcmp.eq.f32.partialorder %v3782, 8.507059e+37
  %v3784 = vand.u32 %v3665, 2147483648
  %v3785 = vor.u32 1.1754944e-38, %v3784
  %v3786 = vsel %vm3783, %v3785, %v3781
  %v3787 = vmul.f32 1.0, %v3786
  %v3788 = vrcp.pop %v3666
  %v3789 = vmul.f32 %v3666, %v3788
  %v3790 = vsub.f32 1.0, %v3789
  %v3791 = vmul.f32 %v3788, %v3790
  %v3792 = vadd.f32 %v3788, %v3791
  %vm3793 = vweird.f32 %v3666
  %vm3794 = vweird.f32 %v3788
  %vm3795 = vmor %vm3793, %vm3794
  %v3796 = vsel %vm3795, %v3788, %v3792
  %v3797 = vand.u32 2147483647, %v3666
  %vm3798 = vcmp.eq.f32.partialorder %v3797, 8.507059e+37
  %v3799 = vand.u32 %v3666, 2147483648
  %v3800 = vor.u32 1.1754944e-38, %v3799
  %v3801 = vsel %vm3798, %v3800, %v3796
  %v3802 = vmul.f32 1.0, %v3801
  %v3803 = vrcp.pop %v3667
  %v3804 = vmul.f32 %v3667, %v3803
  %v3805 = vsub.f32 1.0, %v3804
  %v3806 = vmul.f32 %v3803, %v3805
  %v3807 = vadd.f32 %v3803, %v3806
  %vm3808 = vweird.f32 %v3667
  %vm3809 = vweird.f32 %v3803
  %vm3810 = vmor %vm3808, %vm3809
  %v3811 = vsel %vm3810, %v3803, %v3807
  %v3812 = vand.u32 2147483647, %v3667
  %vm3813 = vcmp.eq.f32.partialorder %v3812, 8.507059e+37
  %v3814 = vand.u32 %v3667, 2147483648
  %v3815 = vor.u32 1.1754944e-38, %v3814
  %v3816 = vsel %vm3813, %v3815, %v3811
  %v3817 = vmul.f32 1.0, %v3816
  %v3828 = vrot.slane %v3697, 6
  %v3829 = vrot.slane %v3712, 4
  %v3830 = vrot.slane %v3727, 2
  %v3831 = vrot.slane %v3757, 6
  %v3832 = vrot.slane %v3772, 4
  %v3833 = vrot.slane %v3787, 2
  %v3834 = vrot.slane %v3817, 6
  %v3835 = vsel %vm3207, %v3682, %v3828
  %vm3836 = vcmask 1045508
  %v3837 = vsel %vm3836, %v3829, %v3830
  %vm3838 = vcmask 1043456
  %v3839 = vsel %vm3838, %v3835, %v3837
  %v3840 = vsel %vm3207, %v3742, %v3831
  %v3841 = vsel %vm3836, %v3832, %v3833
  %v3842 = vsel %vm3838, %v3840, %v3841
  %v3843 = vsel %vm3207, %v3802, %v3834
  %3847 = vst [vmem:[%s5] sm:$0xff] %v3839
  %3848 = vst [vmem:[%s5 + $0x8] sm:$0xff] %v3842
  %vm3849 = vcmask 650242
  %vm3850 = vmor %vm3849, %vm3207
  %3851 = vst.msk [vmem:[%s5 + $0x10] sm:$0xf] %vm3850, %v3843
  // Predicated region
  $region22: #{se_block.1} parent=0 // pred_check
    _
  $region23: #{se_block.1} parent=0 // pred_check_branch
    %3853 = sbr.rel (0) target = $region25
  $region24: #{se_block.1} parent=0 // pred_region
    _
  $region25: #{se_block.1} parent=0 // pred_fallthru
    _
  // Predicated region
  $region26: #{se_block.1} parent=0 // pred_check
    _
  $region27: #{se_block.1} parent=0 // pred_check_branch
    %3855 = sbr.rel (0) target = $region29
  $region28: #{se_block.1} parent=0 // pred_region
    _
  $region29: #{se_block.1} parent=0 // pred_fallthru
    _

</llo_original>
